<compile_context>
chip_gen: v6e
topology: v6e:2x2x1
jax: 0.10.0
libtpu: 0.0.40
codegen_flags: <defaults>
</compile_context>

<pallas_src>
import functools

import jax
import jax.numpy as jnp
import numpy as np
from jax.experimental import pallas as pl
from jax.experimental.pallas import tpu as pltpu


# ----------------------------------------------------------------------------
# Kernel: 3-layer per-point MLP (conv1d ks=1, BN folded) + running max over N.
# ----------------------------------------------------------------------------
def point_mlp_max_kernel(x_ref, w1_ref, b1_ref, w2_ref, b2_ref, w3_ref, b3_ref,
                         o_ref, *, relu_last, n_actual, n_pad, tile_n):
    nt = pl.program_id(2)

    @pl.when(nt == 0)
    def _():
        # Running max accumulates directly into the VMEM-resident output
        # block. Must start at -inf (not 0): the trunk path has
        # relu_last=False and a channel can be all-negative.
        o_ref[...] = jnp.full_like(o_ref, -jnp.inf)

    h = x_ref[0]                                            # (TN, Cin) bf16
    # bf16 MXU operands, f32 accumulation; bias / ReLU epilogues in f32.
    h = jnp.dot(h, w1_ref[0], preferred_element_type=jnp.float32) + b1_ref[...]
    h = jnp.maximum(h, 0.0)
    h = jnp.dot(h.astype(jnp.bfloat16), w2_ref[...],
                preferred_element_type=jnp.float32) + b2_ref[...]
    h = jnp.maximum(h, 0.0)
    # Third-layer bias and (optional) ReLU commute with the max over points;
    # they are deferred to the finalize block below, removing a (TN, 1024)
    # f32 VPU pass per tile on the widest tensor in the kernel.
    h = jnp.dot(h.astype(jnp.bfloat16), w3_ref[...],
                preferred_element_type=jnp.float32)         # (TN, 1024) f32

    if n_pad != n_actual:
        # Mask zero-padded point rows to -inf so they never win the max.
        start = (pl.program_id(1) * pl.num_programs(2) + nt) * tile_n
        rows = jax.lax.broadcasted_iota(jnp.int32, (tile_n, 1), 0) + start
        h = jnp.where(rows < n_actual, h, -jnp.inf)

    # torch.max(x, 2) == max over points == sublane-axis (XLU) reduce here.
    o_ref[0] = jnp.maximum(o_ref[0], jnp.max(h, axis=0, keepdims=True))

    @pl.when(nt == pl.num_programs(2) - 1)
    def _():
        r = o_ref[0] + b3_ref[...]          # deferred bias (constant over N)
        if relu_last:
            r = jnp.maximum(r, 0.0)         # deferred ReLU (monotone)
        o_ref[0] = r


# ----------------------------------------------------------------------------
# pallas_call wrapper
# ----------------------------------------------------------------------------
def _full_spec(a):
    return pl.BlockSpec(a.shape, lambda *_, nd=a.ndim: (0,) * nd)


def _round_up(x, m):
    return ((x + m - 1) // m) * m


def _plan_tiles(n, n_split, max_tile_n):
    """Point tile (multiple of 16), padded N, and tiles-per-split."""
    max_tile_n = max(16, (max_tile_n // 16) * 16)
    tiles_per_split = max(1, -(-n // (n_split * max_tile_n)))
    total_tiles = n_split * tiles_per_split
    tn = _round_up(-(-n // total_tiles), 16)
    return tn, tn * total_tiles, tiles_per_split


def _front_call(x, w1, b1, w2, b2, w3, b3, *, relu_last,
                max_tile_n=2048, n_split=None):
    """Per batch element: 3-layer point MLP (bf16 matmuls) + max over points.

    x:  (B, N, C) bf16
    w1: (1, C, 64) or (B, C, 64) bf16 (per-batch when the STN transform has
        been folded in); w2 (64,128), w3 (128,1024) bf16; biases f32 (1, Cout).
    """
    B, N, C = x.shape
    Cout = w3.shape[1]
    if n_split is None:
        # Give the second TensorCore (v7x) work when B alone can't: split the
        # point axis into 2 parallel partial maxes. No-op elsewhere.
        n_split = 2 if B == 1 else 1
    tn, n_pad, num_nt = _plan_tiles(N, n_split, max_tile_n)

    if n_pad != N:
        x = jnp.pad(x, ((0, 0), (0, n_pad - N), (0, 0)))

    if w1.shape[0] == 1:
        w1_map = lambda b, s, n: (0, 0, 0)
    else:
        w1_map = lambda b, s, n: (b, 0, 0)

    kernel = functools.partial(point_mlp_max_kernel, relu_last=relu_last,
                               n_actual=N, n_pad=n_pad, tile_n=tn)

    out = pl.pallas_call(
        kernel,
        out_shape=jax.ShapeDtypeStruct((B * n_split, 1, Cout), jnp.float32),
        grid=(B, n_split, num_nt),
        in_specs=[
            pl.BlockSpec((1, tn, C), lambda b, s, n: (b, s * num_nt + n, 0)),
            pl.BlockSpec((1,) + w1.shape[1:], w1_map),
            _full_spec(b1), _full_spec(w2), _full_spec(b2),
            _full_spec(w3), _full_spec(b3),
        ],
        out_specs=pl.BlockSpec((1, 1, Cout),
                               lambda b, s, n: (b * n_split + s, 0, 0)),
        compiler_params=pltpu.CompilerParams(
            dimension_semantics=("parallel", "parallel", "arbitrary"),
            vmem_limit_bytes=28 * 1024 * 1024),
    )(x, w1, b1, w2, b2, w3, b3)

    out = out.reshape(B, n_split, Cout)
    if n_split > 1:
        return jnp.max(out, axis=1)
    return out.reshape(B, Cout)


# ----------------------------------------------------------------------------
# Parameter construction (deterministic, BN folded into conv/linear)
# ----------------------------------------------------------------------------
def _fold(w, b, gamma, beta, mean, var, eps=1e-5):
    # y = gamma*(x@W.T + b - mean)/sqrt(var+eps) + beta
    scale = gamma / jnp.sqrt(var + eps)
    w_eff = (w * scale[:, None]).T                    # (Cin, Cout)
    b_eff = scale * b + (beta - scale * mean)         # (Cout,)
    return w_eff.astype(jnp.float32), b_eff.reshape(1, -1).astype(jnp.float32)


def _make_folded(key, cin, cout, eps=1e-5):
    kw, kb, kg, kbe, km, kv = jax.random.split(key, 6)
    w = 0.1 * jax.random.normal(kw, (cout, cin), jnp.float32)
    b = 0.1 * jax.random.normal(kb, (cout,), jnp.float32)
    gamma = 1.0 + 0.1 * jax.random.normal(kg, (cout,), jnp.float32)
    beta = 0.1 * jax.random.normal(kbe, (cout,), jnp.float32)
    mean = 0.1 * jax.random.normal(km, (cout,), jnp.float32)
    var = 1.0 + 0.1 * jnp.abs(jax.random.normal(kv, (cout,), jnp.float32))
    return _fold(w, b, gamma, beta, mean, var, eps)


def _make_linear(key, cin, cout):
    kw, kb = jax.random.split(key)
    w = 0.1 * jax.random.normal(kw, (cout, cin), jnp.float32)
    b = 0.1 * jax.random.normal(kb, (cout,), jnp.float32)
    return w.T.astype(jnp.float32), b.reshape(1, -1).astype(jnp.float32)


def init_params(key, k, eps=1e-5):
    ks = jax.random.split(key, 9)
    bf16 = jnp.bfloat16
    p = {}
    # STNkD point MLP (matmul operands stored in bf16; biases stay f32).
    w, b = _make_folded(ks[0], k, 64, eps)
    p['s_w1'], p['s_b1'] = w[None].astype(bf16), b       # (1, k, 64)
    w, b = _make_folded(ks[1], 64, 128, eps)
    p['s_w2'], p['s_b2'] = w.astype(bf16), b
    w, b = _make_folded(ks[2], 128, 1024, eps)
    p['s_w3'], p['s_b3'] = w.astype(bf16), b
    # STN FC head (tiny, M=B rows; computed in plain jnp / f32).
    p['s_fw1'], p['s_fb1'] = _make_folded(ks[3], 1024, 512, eps)
    p['s_fw2'], p['s_fb2'] = _make_folded(ks[4], 512, 256, eps)
    p['s_fw3'], p['s_fb3'] = _make_linear(ks[5], 256, k * k)
    # PointNetFeat trunk point MLP.
    w, b = _make_folded(ks[6], k, 64, eps)
    p['f_w1'], p['f_b1'] = w[None].astype(bf16), b       # (1, k, 64)
    w, b = _make_folded(ks[7], 64, 128, eps)
    p['f_w2'], p['f_b2'] = w.astype(bf16), b
    w, b = _make_folded(ks[8], 128, 1024, eps)
    p['f_w3'], p['f_b3'] = w.astype(bf16), b
    p['iden'] = jnp.eye(k, dtype=jnp.float32).reshape(1, k * k)
    return p


# ----------------------------------------------------------------------------
# Forward pass
# ----------------------------------------------------------------------------
def _stn_head(g, p):
    """STN FC head: fc1/bn4/relu -> fc2/bn5/relu -> fc3 + flattened identity."""
    h = jnp.maximum(g @ p['s_fw1'] + p['s_fb1'], 0.0)
    h = jnp.maximum(h @ p['s_fw2'] + p['s_fb2'], 0.0)
    return h @ p['s_fw3'] + p['s_fb3'] + p['iden']


def pointnet_feat(x_ncw, p, k, *, max_tile_n=2048):
    """x_ncw: (B, C, N) in PyTorch Conv1d layout. Returns (B, 1024) f32."""
    B, C, N = x_ncw.shape
    x = jnp.transpose(x_ncw, (0, 2, 1)).astype(jnp.bfloat16)  # (B, N, C)

    # STNkD: point MLP + max-pool (Pallas) -> FC head (jnp) -> transform.
    g = _front_call(x, p['s_w1'], p['s_b1'], p['s_w2'], p['s_b2'],
                    p['s_w3'], p['s_b3'], relu_last=True,
                    max_tile_n=max_tile_n)                       # (B, 1024)
    trans = _stn_head(g, p).reshape(B, k, k)                     # (B, k, k)

    # Fold the transform into the first trunk layer: (x@T)@W1 == x@(T@W1).
    w1_eff = jnp.einsum('bij,jc->bic', trans,
                        p['f_w1'][0].astype(jnp.float32)).astype(jnp.bfloat16)

    # Trunk: point MLP (last layer no ReLU) + max-pool.
    return _front_call(x, w1_eff, p['f_b1'], p['f_w2'], p['f_b2'],
                       p['f_w3'], p['f_b3'], relu_last=False,
                       max_tile_n=max_tile_n)                    # (B, 1024)


def reference(x_ncw, p, k):
    """Pure-JAX reference with the same folded params / bf16 matmul operands."""
    B = x_ncw.shape[0]
    x = jnp.transpose(x_ncw, (0, 2, 1)).astype(jnp.bfloat16)

    def mlp_max(xb, w1, b1, w2, b2, w3, b3, relu_last):
        w1b = jnp.broadcast_to(w1, (xb.shape[0],) + w1.shape[1:])
        h = jnp.einsum('bnc,bcd->bnd', xb, w1b,
                       preferred_element_type=jnp.float32) + b1
        h = jnp.maximum(h, 0.0)
        h = jnp.einsum('bnc,cd->bnd', h.astype(jnp.bfloat16), w2,
                       preferred_element_type=jnp.float32) + b2
        h = jnp.maximum(h, 0.0)
        h = jnp.einsum('bnc,cd->bnd', h.astype(jnp.bfloat16), w3,
                       preferred_element_type=jnp.float32) + b3
        if relu_last:
            h = jnp.maximum(h, 0.0)
        return jnp.max(h, axis=1)

    g = mlp_max(x, p['s_w1'], p['s_b1'], p['s_w2'], p['s_b2'],
                p['s_w3'], p['s_b3'], True)
    trans = _stn_head(g, p).reshape(B, k, k)
    w1_eff = jnp.einsum('bij,jc->bic', trans,
                        p['f_w1'][0].astype(jnp.float32)).astype(jnp.bfloat16)
    return mlp_max(x, w1_eff, p['f_b1'], p['f_w2'], p['f_b2'],
                   p['f_w3'], p['f_b3'], False)


if __name__ == "__main__":
    key = jax.random.PRNGKey(0)
    B, K, N = 2, 4, 16  # batch, input_channels (k), num points
    kx, kp = jax.random.split(key)
    x = jax.random.normal(kx, (B, K, N), jnp.float32)  # PyTorch (B, C, N) layout
    params = init_params(kp, K)

    # Single jit so the STN FC head / w1_eff einsum fuse between the two
    # pallas_calls (no extra dispatch / HBM round trip beyond g itself).
    fwd = jax.jit(lambda xx, pp: pointnet_feat(xx, pp, K))
    out = jax.block_until_ready(fwd(x, params))
    assert out.shape == (B, 1024)

    ref = reference(x, params, K)
    np.testing.assert_allclose(np.asarray(out), np.asarray(ref),
                               rtol=2e-3, atol=2e-3)
    print("KERNEL_OK")
</pallas_src>

<mosaic_0001>
module attributes {stable_mosaic.version = 11 : i64} {
  func.func @point_mlp_max_kernel(%arg0: i32, %arg1: i32, %arg2: i32, %arg3: memref<1x16x4xbf16, #tpu.memory_space<vmem>>, %arg4: memref<1x4x64xbf16, #tpu.memory_space<vmem>>, %arg5: memref<1x64xf32, #tpu.memory_space<vmem>>, %arg6: memref<64x128xbf16, #tpu.memory_space<vmem>>, %arg7: memref<1x128xf32, #tpu.memory_space<vmem>>, %arg8: memref<128x1024xbf16, #tpu.memory_space<vmem>>, %arg9: memref<1x1024xf32, #tpu.memory_space<vmem>>, %arg10: memref<1x1x1024xf32, #tpu.memory_space<vmem>>) attributes {dimension_semantics = [#tpu.dimension_semantics<parallel>, #tpu.dimension_semantics<parallel>, #tpu.dimension_semantics<arbitrary>], iteration_bounds = array<i64: 2, 1, 1>, scalar_prefetch = 0 : i64, scratch_operands = 0 : i64, tpu.core_type = #tpu.core_type<tc>, window_params = [{transform_indices = @transform_0, window_bounds = array<i64: 1, 16, 4>}, {pipeline_mode = #tpu.pipeline_mode<synchronous>, transform_indices = @transform_1, window_bounds = array<i64: 1, 4, 64>}, {pipeline_mode = #tpu.pipeline_mode<synchronous>, transform_indices = @transform_2, window_bounds = array<i64: 1, 64>}, {pipeline_mode = #tpu.pipeline_mode<synchronous>, transform_indices = @transform_3, window_bounds = array<i64: 64, 128>}, {pipeline_mode = #tpu.pipeline_mode<synchronous>, transform_indices = @transform_4, window_bounds = array<i64: 1, 128>}, {pipeline_mode = #tpu.pipeline_mode<synchronous>, transform_indices = @transform_5, window_bounds = array<i64: 128, 1024>}, {pipeline_mode = #tpu.pipeline_mode<synchronous>, transform_indices = @transform_6, window_bounds = array<i64: 1, 1024>}, {transform_indices = @transform_7, window_bounds = array<i64: 1, 1, 1024>}]} {
    %c0_i32 = arith.constant 0 : i32
    %0 = arith.cmpi eq, %arg2, %c0_i32 : i32
    %1 = arith.extui %0 : i1 to i32
    %c0_i32_0 = arith.constant 0 : i32
    %2 = arith.cmpi ne, %1, %c0_i32_0 : i32
    scf.if %2 {
      %cst_27 = arith.constant 0xFF800000 : f32
      %35 = vector.broadcast %cst_27 : f32 to vector<1x1x1024xf32>
      %c0_28 = arith.constant 0 : index
      %c0_29 = arith.constant 0 : index
      %c0_30 = arith.constant 0 : index
      %36 = vector.load %arg10[%c0_28, %c0_29, %c0_30] : memref<1x1x1024xf32, #tpu.memory_space<vmem>>, vector<1x1x1024xf32>
      tpu.vector_store %arg10[%c0_28, %c0_29, %c0_30], %35 {strides = array<i32>} : memref<1x1x1024xf32, #tpu.memory_space<vmem>>, vector<1x1x1024xf32>,
    } else {
    }
    %c0 = arith.constant 0 : index
    %c0_1 = arith.constant 0 : index
    %c0_2 = arith.constant 0 : index
    %3 = vector.load %arg3[%c0, %c0_1, %c0_2] : memref<1x16x4xbf16, #tpu.memory_space<vmem>>, vector<1x16x4xbf16>
    %4 = vector.shape_cast %3 : vector<1x16x4xbf16> to vector<16x4xbf16>
    %c0_3 = arith.constant 0 : index
    %c0_4 = arith.constant 0 : index
    %c0_5 = arith.constant 0 : index
    %5 = vector.load %arg4[%c0_3, %c0_4, %c0_5] : memref<1x4x64xbf16, #tpu.memory_space<vmem>>, vector<1x4x64xbf16>
    %6 = vector.shape_cast %5 : vector<1x4x64xbf16> to vector<4x64xbf16>
    %cst = arith.constant dense<0.000000e+00> : vector<16x64xf32>
    %7 = tpu.matmul %4, %6, %cst {dimension_numbers = #tpu.dot_dimension_numbers<[1], [0], [0], [1], [0, 0, 1, 1], [], []>} : vector<16x4xbf16>, vector<4x64xbf16>, vector<16x64xf32> -> vector<16x64xf32>
    %c0_6 = arith.constant 0 : index
    %c0_7 = arith.constant 0 : index
    %8 = vector.load %arg5[%c0_6, %c0_7] : memref<1x64xf32, #tpu.memory_space<vmem>>, vector<1x64xf32>
    %9 = vector.broadcast %8 : vector<1x64xf32> to vector<16x64xf32>
    %10 = arith.addf %7, %9 : vector<16x64xf32>
    %cst_8 = arith.constant 0.000000e+00 : f32
    %11 = vector.broadcast %cst_8 : f32 to vector<16x64xf32>
    %12 = arith.maximumf %10, %11 : vector<16x64xf32>
    %13 = arith.truncf %12 : vector<16x64xf32> to vector<16x64xbf16>
    %c0_9 = arith.constant 0 : index
    %c0_10 = arith.constant 0 : index
    %14 = vector.load %arg6[%c0_9, %c0_10] : memref<64x128xbf16, #tpu.memory_space<vmem>>, vector<64x128xbf16>
    %cst_11 = arith.constant dense<0.000000e+00> : vector<16x128xf32>
    %15 = tpu.matmul %13, %14, %cst_11 {dimension_numbers = #tpu.dot_dimension_numbers<[1], [0], [0], [1], [0, 0, 1, 1], [], []>} : vector<16x64xbf16>, vector<64x128xbf16>, vector<16x128xf32> -> vector<16x128xf32>
    %c0_12 = arith.constant 0 : index
    %c0_13 = arith.constant 0 : index
    %16 = vector.load %arg7[%c0_12, %c0_13] : memref<1x128xf32, #tpu.memory_space<vmem>>, vector<1x128xf32>
    %17 = vector.broadcast %16 : vector<1x128xf32> to vector<16x128xf32>
    %18 = arith.addf %15, %17 : vector<16x128xf32>
    %cst_14 = arith.constant 0.000000e+00 : f32
    %19 = vector.broadcast %cst_14 : f32 to vector<16x128xf32>
    %20 = arith.maximumf %18, %19 : vector<16x128xf32>
    %21 = arith.truncf %20 : vector<16x128xf32> to vector<16x128xbf16>
    %c0_15 = arith.constant 0 : index
    %c0_16 = arith.constant 0 : index
    %22 = vector.load %arg8[%c0_15, %c0_16] : memref<128x1024xbf16, #tpu.memory_space<vmem>>, vector<128x1024xbf16>
    %cst_17 = arith.constant dense<0.000000e+00> : vector<16x1024xf32>
    %23 = tpu.matmul %21, %22, %cst_17 {dimension_numbers = #tpu.dot_dimension_numbers<[1], [0], [0], [1], [0, 0, 1, 1], [], []>} : vector<16x128xbf16>, vector<128x1024xbf16>, vector<16x1024xf32> -> vector<16x1024xf32>
    %c0_18 = arith.constant 0 : index
    %c0_19 = arith.constant 0 : index
    %c0_20 = arith.constant 0 : index
    %24 = vector.load %arg10[%c0_18, %c0_19, %c0_20] : memref<1x1x1024xf32, #tpu.memory_space<vmem>>, vector<1x1x1024xf32>
    %25 = vector.shape_cast %24 : vector<1x1x1024xf32> to vector<1x1024xf32>
    %cst_21 = arith.constant dense<0xFF800000> : vector<1024xf32>
    %26 = vector.multi_reduction <maximumf>, %23, %cst_21 [0] : vector<16x1024xf32> to vector<1024xf32>
    %27 = vector.shape_cast %26 : vector<1024xf32> to vector<1x1024xf32>
    %28 = arith.maximumf %25, %27 : vector<1x1024xf32>
    %c0_22 = arith.constant 0 : index
    %c0_23 = arith.constant 0 : index
    %c0_24 = arith.constant 0 : index
    %29 = vector.load %arg10[%c0_22, %c0_23, %c0_24] : memref<1x1x1024xf32, #tpu.memory_space<vmem>>, vector<1x1x1024xf32>
    %30 = vector.shape_cast %29 : vector<1x1x1024xf32> to vector<1x1024xf32>
    %31 = vector.shape_cast %28 : vector<1x1024xf32> to vector<1x1x1024xf32>
    tpu.vector_store %arg10[%c0_22, %c0_23, %c0_24], %31 {strides = array<i32>} : memref<1x1x1024xf32, #tpu.memory_space<vmem>>, vector<1x1x1024xf32>,
    %c0_i32_25 = arith.constant 0 : i32
    %32 = arith.cmpi eq, %arg2, %c0_i32_25 : i32
    %33 = arith.extui %32 : i1 to i32
    %c0_i32_26 = arith.constant 0 : i32
    %34 = arith.cmpi ne, %33, %c0_i32_26 : i32
    scf.if %34 {
      %c0_27 = arith.constant 0 : index
      %c0_28 = arith.constant 0 : index
      %c0_29 = arith.constant 0 : index
      %35 = vector.load %arg10[%c0_27, %c0_28, %c0_29] : memref<1x1x1024xf32, #tpu.memory_space<vmem>>, vector<1x1x1024xf32>
      %36 = vector.shape_cast %35 : vector<1x1x1024xf32> to vector<1x1024xf32>
      %c0_30 = arith.constant 0 : index
      %c0_31 = arith.constant 0 : index
      %37 = vector.load %arg9[%c0_30, %c0_31] : memref<1x1024xf32, #tpu.memory_space<vmem>>, vector<1x1024xf32>
      %38 = arith.addf %36, %37 : vector<1x1024xf32>
      %cst_32 = arith.constant 0.000000e+00 : f32
      %39 = vector.broadcast %cst_32 : f32 to vector<1x1024xf32>
      %40 = arith.maximumf %38, %39 : vector<1x1024xf32>
      %c0_33 = arith.constant 0 : index
      %c0_34 = arith.constant 0 : index
      %c0_35 = arith.constant 0 : index
      %41 = vector.load %arg10[%c0_33, %c0_34, %c0_35] : memref<1x1x1024xf32, #tpu.memory_space<vmem>>, vector<1x1x1024xf32>
      %42 = vector.shape_cast %41 : vector<1x1x1024xf32> to vector<1x1024xf32>
      %43 = vector.shape_cast %40 : vector<1x1024xf32> to vector<1x1x1024xf32>
      tpu.vector_store %arg10[%c0_33, %c0_34, %c0_35], %43 {strides = array<i32>} : memref<1x1x1024xf32, #tpu.memory_space<vmem>>, vector<1x1x1024xf32>,
    } else {
    }
    return
  }
  func.func @transform_0(%arg0: i32, %arg1: i32, %arg2: i32) -> (i32, i32, i32) {
    %c1_i32 = arith.constant 1 : i32
    %0 = arith.muli %arg1, %c1_i32 : i32
    %1 = arith.addi %0, %arg2 : i32
    %c0_i32 = arith.constant 0 : i32
    %c0_i32_0 = arith.constant 0 : i32
    return %arg0, %1, %c0_i32 : i32, i32, i32
  }
  func.func @transform_1(%arg0: i32, %arg1: i32, %arg2: i32) -> (i32, i32, i32) {
    %c0_i32 = arith.constant 0 : i32
    %c0_i32_0 = arith.constant 0 : i32
    %c0_i32_1 = arith.constant 0 : i32
    %c0_i32_2 = arith.constant 0 : i32
    return %c0_i32, %c0_i32_0, %c0_i32_1 : i32, i32, i32
  }
  func.func @transform_2(%arg0: i32, %arg1: i32, %arg2: i32) -> (i32, i32) {
    %c0_i32 = arith.constant 0 : i32
    %c0_i32_0 = arith.constant 0 : i32
    %c0_i32_1 = arith.constant 0 : i32
    return %c0_i32, %c0_i32_0 : i32, i32
  }
  func.func @transform_3(%arg0: i32, %arg1: i32, %arg2: i32) -> (i32, i32) {
    %c0_i32 = arith.constant 0 : i32
    %c0_i32_0 = arith.constant 0 : i32
    %c0_i32_1 = arith.constant 0 : i32
    return %c0_i32, %c0_i32_0 : i32, i32
  }
  func.func @transform_4(%arg0: i32, %arg1: i32, %arg2: i32) -> (i32, i32) {
    %c0_i32 = arith.constant 0 : i32
    %c0_i32_0 = arith.constant 0 : i32
    %c0_i32_1 = arith.constant 0 : i32
    return %c0_i32, %c0_i32_0 : i32, i32
  }
  func.func @transform_5(%arg0: i32, %arg1: i32, %arg2: i32) -> (i32, i32) {
    %c0_i32 = arith.constant 0 : i32
    %c0_i32_0 = arith.constant 0 : i32
    %c0_i32_1 = arith.constant 0 : i32
    return %c0_i32, %c0_i32_0 : i32, i32
  }
  func.func @transform_6(%arg0: i32, %arg1: i32, %arg2: i32) -> (i32, i32) {
    %c0_i32 = arith.constant 0 : i32
    %c0_i32_0 = arith.constant 0 : i32
    %c0_i32_1 = arith.constant 0 : i32
    return %c0_i32, %c0_i32_0 : i32, i32
  }
  func.func @transform_7(%arg0: i32, %arg1: i32, %arg2: i32) -> (i32, i32, i32) {
    %c1_i32 = arith.constant 1 : i32
    %0 = arith.muli %arg0, %c1_i32 : i32
    %1 = arith.addi %0, %arg1 : i32
    %c0_i32 = arith.constant 0 : i32
    %c0_i32_0 = arith.constant 0 : i32
    %c0_i32_1 = arith.constant 0 : i32
    return %1, %c0_i32, %c0_i32_0 : i32, i32, i32
  }
}

module attributes {stable_mosaic.version = 11 : i64} {
  func.func @point_mlp_max_kernel(%arg0: i32, %arg1: i32, %arg2: i32, %arg3: memref<1x16x4xbf16, #tpu.memory_space<vmem>>, %arg4: memref<1x4x64xbf16, #tpu.memory_space<vmem>>, %arg5: memref<1x64xf32, #tpu.memory_space<vmem>>, %arg6: memref<64x128xbf16, #tpu.memory_space<vmem>>, %arg7: memref<1x128xf32, #tpu.memory_space<vmem>>, %arg8: memref<128x1024xbf16, #tpu.memory_space<vmem>>, %arg9: memref<1x1024xf32, #tpu.memory_space<vmem>>, %arg10: memref<1x1x1024xf32, #tpu.memory_space<vmem>>) attributes {dimension_semantics = [#tpu.dimension_semantics<parallel>, #tpu.dimension_semantics<parallel>, #tpu.dimension_semantics<arbitrary>], iteration_bounds = array<i64: 2, 1, 1>, scalar_prefetch = 0 : i64, scratch_operands = 0 : i64, tpu.core_type = #tpu.core_type<tc>, window_params = [{transform_indices = @transform_0, window_bounds = array<i64: 1, 16, 4>}, {transform_indices = @transform_1, window_bounds = array<i64: 1, 4, 64>}, {pipeline_mode = #tpu.pipeline_mode<synchronous>, transform_indices = @transform_2, window_bounds = array<i64: 1, 64>}, {pipeline_mode = #tpu.pipeline_mode<synchronous>, transform_indices = @transform_3, window_bounds = array<i64: 64, 128>}, {pipeline_mode = #tpu.pipeline_mode<synchronous>, transform_indices = @transform_4, window_bounds = array<i64: 1, 128>}, {pipeline_mode = #tpu.pipeline_mode<synchronous>, transform_indices = @transform_5, window_bounds = array<i64: 128, 1024>}, {pipeline_mode = #tpu.pipeline_mode<synchronous>, transform_indices = @transform_6, window_bounds = array<i64: 1, 1024>}, {transform_indices = @transform_7, window_bounds = array<i64: 1, 1, 1024>}]} {
    %c0_i32 = arith.constant 0 : i32
    %0 = arith.cmpi eq, %arg2, %c0_i32 : i32
    %1 = arith.extui %0 : i1 to i32
    %c0_i32_0 = arith.constant 0 : i32
    %2 = arith.cmpi ne, %1, %c0_i32_0 : i32
    scf.if %2 {
      %cst_27 = arith.constant 0xFF800000 : f32
      %35 = vector.broadcast %cst_27 : f32 to vector<1x1x1024xf32>
      %c0_28 = arith.constant 0 : index
      %c0_29 = arith.constant 0 : index
      %c0_30 = arith.constant 0 : index
      %36 = vector.load %arg10[%c0_28, %c0_29, %c0_30] : memref<1x1x1024xf32, #tpu.memory_space<vmem>>, vector<1x1x1024xf32>
      tpu.vector_store %arg10[%c0_28, %c0_29, %c0_30], %35 {strides = array<i32>} : memref<1x1x1024xf32, #tpu.memory_space<vmem>>, vector<1x1x1024xf32>,
    } else {
    }
    %c0 = arith.constant 0 : index
    %c0_1 = arith.constant 0 : index
    %c0_2 = arith.constant 0 : index
    %3 = vector.load %arg3[%c0, %c0_1, %c0_2] : memref<1x16x4xbf16, #tpu.memory_space<vmem>>, vector<1x16x4xbf16>
    %4 = vector.shape_cast %3 : vector<1x16x4xbf16> to vector<16x4xbf16>
    %c0_3 = arith.constant 0 : index
    %c0_4 = arith.constant 0 : index
    %c0_5 = arith.constant 0 : index
    %5 = vector.load %arg4[%c0_3, %c0_4, %c0_5] : memref<1x4x64xbf16, #tpu.memory_space<vmem>>, vector<1x4x64xbf16>
    %6 = vector.shape_cast %5 : vector<1x4x64xbf16> to vector<4x64xbf16>
    %cst = arith.constant dense<0.000000e+00> : vector<16x64xf32>
    %7 = tpu.matmul %4, %6, %cst {dimension_numbers = #tpu.dot_dimension_numbers<[1], [0], [0], [1], [0, 0, 1, 1], [], []>} : vector<16x4xbf16>, vector<4x64xbf16>, vector<16x64xf32> -> vector<16x64xf32>
    %c0_6 = arith.constant 0 : index
    %c0_7 = arith.constant 0 : index
    %8 = vector.load %arg5[%c0_6, %c0_7] : memref<1x64xf32, #tpu.memory_space<vmem>>, vector<1x64xf32>
    %9 = vector.broadcast %8 : vector<1x64xf32> to vector<16x64xf32>
    %10 = arith.addf %7, %9 : vector<16x64xf32>
    %cst_8 = arith.constant 0.000000e+00 : f32
    %11 = vector.broadcast %cst_8 : f32 to vector<16x64xf32>
    %12 = arith.maximumf %10, %11 : vector<16x64xf32>
    %13 = arith.truncf %12 : vector<16x64xf32> to vector<16x64xbf16>
    %c0_9 = arith.constant 0 : index
    %c0_10 = arith.constant 0 : index
    %14 = vector.load %arg6[%c0_9, %c0_10] : memref<64x128xbf16, #tpu.memory_space<vmem>>, vector<64x128xbf16>
    %cst_11 = arith.constant dense<0.000000e+00> : vector<16x128xf32>
    %15 = tpu.matmul %13, %14, %cst_11 {dimension_numbers = #tpu.dot_dimension_numbers<[1], [0], [0], [1], [0, 0, 1, 1], [], []>} : vector<16x64xbf16>, vector<64x128xbf16>, vector<16x128xf32> -> vector<16x128xf32>
    %c0_12 = arith.constant 0 : index
    %c0_13 = arith.constant 0 : index
    %16 = vector.load %arg7[%c0_12, %c0_13] : memref<1x128xf32, #tpu.memory_space<vmem>>, vector<1x128xf32>
    %17 = vector.broadcast %16 : vector<1x128xf32> to vector<16x128xf32>
    %18 = arith.addf %15, %17 : vector<16x128xf32>
    %cst_14 = arith.constant 0.000000e+00 : f32
    %19 = vector.broadcast %cst_14 : f32 to vector<16x128xf32>
    %20 = arith.maximumf %18, %19 : vector<16x128xf32>
    %21 = arith.truncf %20 : vector<16x128xf32> to vector<16x128xbf16>
    %c0_15 = arith.constant 0 : index
    %c0_16 = arith.constant 0 : index
    %22 = vector.load %arg8[%c0_15, %c0_16] : memref<128x1024xbf16, #tpu.memory_space<vmem>>, vector<128x1024xbf16>
    %cst_17 = arith.constant dense<0.000000e+00> : vector<16x1024xf32>
    %23 = tpu.matmul %21, %22, %cst_17 {dimension_numbers = #tpu.dot_dimension_numbers<[1], [0], [0], [1], [0, 0, 1, 1], [], []>} : vector<16x128xbf16>, vector<128x1024xbf16>, vector<16x1024xf32> -> vector<16x1024xf32>
    %c0_18 = arith.constant 0 : index
    %c0_19 = arith.constant 0 : index
    %c0_20 = arith.constant 0 : index
    %24 = vector.load %arg10[%c0_18, %c0_19, %c0_20] : memref<1x1x1024xf32, #tpu.memory_space<vmem>>, vector<1x1x1024xf32>
    %25 = vector.shape_cast %24 : vector<1x1x1024xf32> to vector<1x1024xf32>
    %cst_21 = arith.constant dense<0xFF800000> : vector<1024xf32>
    %26 = vector.multi_reduction <maximumf>, %23, %cst_21 [0] : vector<16x1024xf32> to vector<1024xf32>
    %27 = vector.shape_cast %26 : vector<1024xf32> to vector<1x1024xf32>
    %28 = arith.maximumf %25, %27 : vector<1x1024xf32>
    %c0_22 = arith.constant 0 : index
    %c0_23 = arith.constant 0 : index
    %c0_24 = arith.constant 0 : index
    %29 = vector.load %arg10[%c0_22, %c0_23, %c0_24] : memref<1x1x1024xf32, #tpu.memory_space<vmem>>, vector<1x1x1024xf32>
    %30 = vector.shape_cast %29 : vector<1x1x1024xf32> to vector<1x1024xf32>
    %31 = vector.shape_cast %28 : vector<1x1024xf32> to vector<1x1x1024xf32>
    tpu.vector_store %arg10[%c0_22, %c0_23, %c0_24], %31 {strides = array<i32>} : memref<1x1x1024xf32, #tpu.memory_space<vmem>>, vector<1x1x1024xf32>,
    %c0_i32_25 = arith.constant 0 : i32
    %32 = arith.cmpi eq, %arg2, %c0_i32_25 : i32
    %33 = arith.extui %32 : i1 to i32
    %c0_i32_26 = arith.constant 0 : i32
    %34 = arith.cmpi ne, %33, %c0_i32_26 : i32
    scf.if %34 {
      %c0_27 = arith.constant 0 : index
      %c0_28 = arith.constant 0 : index
      %c0_29 = arith.constant 0 : index
      %35 = vector.load %arg10[%c0_27, %c0_28, %c0_29] : memref<1x1x1024xf32, #tpu.memory_space<vmem>>, vector<1x1x1024xf32>
      %36 = vector.shape_cast %35 : vector<1x1x1024xf32> to vector<1x1024xf32>
      %c0_30 = arith.constant 0 : index
      %c0_31 = arith.constant 0 : index
      %37 = vector.load %arg9[%c0_30, %c0_31] : memref<1x1024xf32, #tpu.memory_space<vmem>>, vector<1x1024xf32>
      %38 = arith.addf %36, %37 : vector<1x1024xf32>
      %c0_32 = arith.constant 0 : index
      %c0_33 = arith.constant 0 : index
      %c0_34 = arith.constant 0 : index
      %39 = vector.load %arg10[%c0_32, %c0_33, %c0_34] : memref<1x1x1024xf32, #tpu.memory_space<vmem>>, vector<1x1x1024xf32>
      %40 = vector.shape_cast %39 : vector<1x1x1024xf32> to vector<1x1024xf32>
      %41 = vector.shape_cast %38 : vector<1x1024xf32> to vector<1x1x1024xf32>
      tpu.vector_store %arg10[%c0_32, %c0_33, %c0_34], %41 {strides = array<i32>} : memref<1x1x1024xf32, #tpu.memory_space<vmem>>, vector<1x1x1024xf32>,
    } else {
    }
    return
  }
  func.func @transform_0(%arg0: i32, %arg1: i32, %arg2: i32) -> (i32, i32, i32) {
    %c1_i32 = arith.constant 1 : i32
    %0 = arith.muli %arg1, %c1_i32 : i32
    %1 = arith.addi %0, %arg2 : i32
    %c0_i32 = arith.constant 0 : i32
    %c0_i32_0 = arith.constant 0 : i32
    return %arg0, %1, %c0_i32 : i32, i32, i32
  }
  func.func @transform_1(%arg0: i32, %arg1: i32, %arg2: i32) -> (i32, i32, i32) {
    %c0_i32 = arith.constant 0 : i32
    %c0_i32_0 = arith.constant 0 : i32
    %c0_i32_1 = arith.constant 0 : i32
    return %arg0, %c0_i32, %c0_i32_0 : i32, i32, i32
  }
  func.func @transform_2(%arg0: i32, %arg1: i32, %arg2: i32) -> (i32, i32) {
    %c0_i32 = arith.constant 0 : i32
    %c0_i32_0 = arith.constant 0 : i32
    %c0_i32_1 = arith.constant 0 : i32
    return %c0_i32, %c0_i32_0 : i32, i32
  }
  func.func @transform_3(%arg0: i32, %arg1: i32, %arg2: i32) -> (i32, i32) {
    %c0_i32 = arith.constant 0 : i32
    %c0_i32_0 = arith.constant 0 : i32
    %c0_i32_1 = arith.constant 0 : i32
    return %c0_i32, %c0_i32_0 : i32, i32
  }
  func.func @transform_4(%arg0: i32, %arg1: i32, %arg2: i32) -> (i32, i32) {
    %c0_i32 = arith.constant 0 : i32
    %c0_i32_0 = arith.constant 0 : i32
    %c0_i32_1 = arith.constant 0 : i32
    return %c0_i32, %c0_i32_0 : i32, i32
  }
  func.func @transform_5(%arg0: i32, %arg1: i32, %arg2: i32) -> (i32, i32) {
    %c0_i32 = arith.constant 0 : i32
    %c0_i32_0 = arith.constant 0 : i32
    %c0_i32_1 = arith.constant 0 : i32
    return %c0_i32, %c0_i32_0 : i32, i32
  }
  func.func @transform_6(%arg0: i32, %arg1: i32, %arg2: i32) -> (i32, i32) {
    %c0_i32 = arith.constant 0 : i32
    %c0_i32_0 = arith.constant 0 : i32
    %c0_i32_1 = arith.constant 0 : i32
    return %c0_i32, %c0_i32_0 : i32, i32
  }
  func.func @transform_7(%arg0: i32, %arg1: i32, %arg2: i32) -> (i32, i32, i32) {
    %c1_i32 = arith.constant 1 : i32
    %0 = arith.muli %arg0, %c1_i32 : i32
    %1 = arith.addi %0, %arg1 : i32
    %c0_i32 = arith.constant 0 : i32
    %c0_i32_0 = arith.constant 0 : i32
    %c0_i32_1 = arith.constant 0 : i32
    return %1, %c0_i32, %c0_i32_0 : i32, i32, i32
  }
}

</mosaic_0001>

<llo_original>
// kernel: _lambda_.2
$region0: #{_lambda_.2}
  #allocation0 [shape = 'u32[]', space=smem, size = 0x4, offset = 0x4, fixed_abs, tag = 'smem constant byte address 0x4 - core index']
  #allocation1 [shape = 'u32[144,128]{1,0:T(1,128)}', space=vmem, size = 0x12000, scoped, tag = 'internal scratch']
  %s0 = inlined_call_operand.vmem [shape: bf16[2,16,4], index: 0, kind: input, shape index: {}]
  %s1 = inlined_call_operand.hbm [shape: bf16[1,4,64], index: 1, kind: input, shape index: {}]
  %s2 = inlined_call_operand.hbm [shape: f32[1,64], index: 2, kind: input, shape index: {}]
  %s3 = inlined_call_operand.hbm [shape: bf16[64,128], index: 3, kind: input, shape index: {}]
  %s4 = inlined_call_operand.hbm [shape: f32[1,128], index: 4, kind: input, shape index: {}]
  %s5 = inlined_call_operand.hbm [shape: bf16[128,1024], index: 5, kind: input, shape index: {}]
  %s6 = inlined_call_operand.hbm [shape: f32[1,1024], index: 6, kind: input, shape index: {}]
  %s7 = inlined_call_operand.vmem [shape: f32[2,1,1024], index: 7, kind: output, shape index: {}]
  %s8 = sld [smem:[#allocation0]]
  $region93: #{_lambda_.2} parent=0
    _
  %s10 = ssub.s32 1, %s8
  %s11 = scalar_select 0, %s10, %s8
  $region1: #{_lambda_.2} parent=0
    #allocation2 [shape = 'u8[1024]{0}', space=vmem, size = 0x400, scoped, tag = 'input window, operand 1, single buffered']
    #allocation3 [shape = 's32[2]{0}', space=sflag, size = 0x8, scoped, tag = 'scoped memory for _lambda_.2']
    #allocation4 [shape = 'u8[512]{0}', space=vmem, size = 0x400, scoped, tag = 'input window, operand 2, single buffered']
    #allocation5 [shape = 's32[1]{0}', space=sflag, size = 0x4, scoped, tag = 'scoped memory for _lambda_.2']
    #allocation6 [shape = 'u8[16384]{0}', space=vmem, size = 0x4000, scoped, tag = 'input window, operand 3, single buffered']
    #allocation7 [shape = 'u8[512]{0}', space=vmem, size = 0x400, scoped, tag = 'input window, operand 4, single buffered']
    #allocation8 [shape = 's32[1]{0}', space=sflag, size = 0x4, scoped, tag = 'scoped memory for _lambda_.2']
    #allocation9 [shape = 'u8[262144]{0}', space=vmem, size = 0x40000, scoped, tag = 'input window, operand 5, single buffered']
    #allocation10 [shape = 'u8[4096]{0}', space=vmem, size = 0x1000, scoped, tag = 'input window, operand 6, single buffered']
    #allocation11 [shape = 's32[1]{0}', space=sflag, size = 0x4, scoped, tag = 'scoped memory for _lambda_.2']
    %12 = vsyncpa [#allocation3], 0
    %13 = vsyncpa [#allocation5], 0
    %14 = vsyncpa [#allocation8], 0
    %15 = vsyncpa [#allocation11], 0
    loop: start=0, step=1, limit=4
    $region2: #{_lambda_.2} parent=1 // loop_pre_header
      _
    $region3: #{_lambda_.2} parent=1 // loop_header
      %s17 = sphi 0, %s21
      %p18 = scmp.ge.s32.totalorder %s17, 4
      %s24 = sphi 0, %s43
      %s25 = sphi 0, %s39
      %s26 = sphi 0, %s35
      %s27 = sphi 0, %s24
      %s28 = sphi 0, %s25
      %s29 = sphi 0, %s26
      %s30 = sphi 0, %s27
      %s31 = sphi 0, %s28
      %s32 = sphi 0, %s29
      %s50 = sphi 0, %s52
      %s53 = sphi 0, %s50
      %s54 = sphi 0, %s53
      %s70 = sphi 0, %s54
      %s74 = sphi 0, %s74
      %s76 = sphi 0, %s74
      %s77 = sphi 0, %s76
      %s91 = sphi 0, %s77
      %s95 = sphi 0, %s95
      %s97 = sphi 0, %s95
      %s98 = sphi 0, %s97
      %s112 = sphi 0, %s98
      %s116 = sphi 0, %s116
      %s118 = sphi 0, %s116
      %s119 = sphi 0, %s118
      %s133 = sphi 0, %s119
      %s137 = sphi 0, %s137
      %s139 = sphi 0, %s137
      %s140 = sphi 0, %s139
      %s154 = sphi 0, %s140
      %s158 = sphi 0, %s158
      %s160 = sphi 0, %s158
      %s161 = sphi 0, %s160
      %s175 = sphi 0, %s161
      %s179 = sphi 0, %s179
      %s181 = sphi 0, %s179
      %s182 = sphi 0, %s181
      %s196 = sphi 0, %s182
      %s204 = sphi 0, %s206
      %s207 = sphi 0, %s204
      %s208 = sphi 0, %s207
      %s224 = sphi 0, %s208
    $region4: #{_lambda_.2} parent=1 // loop_header_branch
      %20 = sbr.rel (%p18) target = $region8
    $region5: #{_lambda_.2} parent=1 // loop_body
      %s22 = ssub.s32 %s17, 1
      %s23 = ssub.s32 %s17, 2
      %s33 = sadd.s32 1, %s26
      %p34 = scmp.ge.s32.totalorder %s33, 1
      %s35 = scalar_select %p34, 0, %s33
      %s36 = sadd.s32 1, %s25
      %s37 = scalar_select %p34, %s36, %s25
      %p38 = scmp.ge.s32.totalorder %s37, 1
      %s39 = scalar_select %p38, 0, %s37
      %s40 = sadd.s32 1, %s24
      %s41 = scalar_select %p38, %s40, %s24
      %p42 = scmp.ge.s32.totalorder %s41, 2
      %s43 = scalar_select %p42, 0, %s41
      %s44 = sadd.s32 %s25, %s26
      %s45 = sadd.s32 %s39, %s35
      %s46 = ssub.s32 %s24, %s43
      %s47 = ssub.s32 %s44, %s45
      %s48 = sor.u32 %s46, %s47
      %p49 = scmp.eq.s32.totalorder %s48, 0
      %s51 = sadd.s32 %s50, 1
      %s52 = scalar_select %p49, %s50, %s51
      %p55 = pneg %p49
      %p56 = scmp.eq.s32.totalorder %s17, 1
      %p57 = por %p55, %p56
      %p58 = scmp.ne.s32.totalorder %s50, %s53
      %p59 = scmp.eq.s32.totalorder %s17, 0
      %p60 = por %p58, %p59
      %p61 = scmp.ne.s32.totalorder %s50, %s53
      %p62 = scmp.eq.s32.totalorder %s22, 1
      %p63 = por %p61, %p62
      %p64 = scmp.ne.s32.totalorder %s53, %s54
      %p65 = scmp.eq.s32.totalorder %s22, 0
      %p66 = por %p64, %p65
      %p67 = scmp.ne.s32.totalorder %s53, %s54
      %p68 = scmp.eq.s32.totalorder %s23, 1
      %p69 = por %p67, %p68
      %p71 = scmp.ne.s32.totalorder %s54, %s70
      %p72 = scmp.eq.s32.totalorder %s23, 0
      %p73 = por %p71, %p72
      %s75 = sadd.s32 %s74, 1
      %p78 = scmp.eq.s32.totalorder %s17, 1
      %p79 = scmp.ne.s32.totalorder %s74, %s76
      %p80 = scmp.eq.s32.totalorder %s17, 0
      %p81 = por %p79, %p80
      %p82 = scmp.ne.s32.totalorder %s74, %s76
      %p83 = scmp.eq.s32.totalorder %s22, 1
      %p84 = por %p82, %p83
      %p85 = scmp.ne.s32.totalorder %s76, %s77
      %p86 = scmp.eq.s32.totalorder %s22, 0
      %p87 = por %p85, %p86
      %p88 = scmp.ne.s32.totalorder %s76, %s77
      %p89 = scmp.eq.s32.totalorder %s23, 1
      %p90 = por %p88, %p89
      %p92 = scmp.ne.s32.totalorder %s77, %s91
      %p93 = scmp.eq.s32.totalorder %s23, 0
      %p94 = por %p92, %p93
      %s96 = sadd.s32 %s95, 1
      %p99 = scmp.eq.s32.totalorder %s17, 1
      %p100 = scmp.ne.s32.totalorder %s95, %s97
      %p101 = scmp.eq.s32.totalorder %s17, 0
      %p102 = por %p100, %p101
      %p103 = scmp.ne.s32.totalorder %s95, %s97
      %p104 = scmp.eq.s32.totalorder %s22, 1
      %p105 = por %p103, %p104
      %p106 = scmp.ne.s32.totalorder %s97, %s98
      %p107 = scmp.eq.s32.totalorder %s22, 0
      %p108 = por %p106, %p107
      %p109 = scmp.ne.s32.totalorder %s97, %s98
      %p110 = scmp.eq.s32.totalorder %s23, 1
      %p111 = por %p109, %p110
      %p113 = scmp.ne.s32.totalorder %s98, %s112
      %p114 = scmp.eq.s32.totalorder %s23, 0
      %p115 = por %p113, %p114
      %s117 = sadd.s32 %s116, 1
      %p120 = scmp.eq.s32.totalorder %s17, 1
      %p121 = scmp.ne.s32.totalorder %s116, %s118
      %p122 = scmp.eq.s32.totalorder %s17, 0
      %p123 = por %p121, %p122
      %p124 = scmp.ne.s32.totalorder %s116, %s118
      %p125 = scmp.eq.s32.totalorder %s22, 1
      %p126 = por %p124, %p125
      %p127 = scmp.ne.s32.totalorder %s118, %s119
      %p128 = scmp.eq.s32.totalorder %s22, 0
      %p129 = por %p127, %p128
      %p130 = scmp.ne.s32.totalorder %s118, %s119
      %p131 = scmp.eq.s32.totalorder %s23, 1
      %p132 = por %p130, %p131
      %p134 = scmp.ne.s32.totalorder %s119, %s133
      %p135 = scmp.eq.s32.totalorder %s23, 0
      %p136 = por %p134, %p135
      %s138 = sadd.s32 %s137, 1
      %p141 = scmp.eq.s32.totalorder %s17, 1
      %p142 = scmp.ne.s32.totalorder %s137, %s139
      %p143 = scmp.eq.s32.totalorder %s17, 0
      %p144 = por %p142, %p143
      %p145 = scmp.ne.s32.totalorder %s137, %s139
      %p146 = scmp.eq.s32.totalorder %s22, 1
      %p147 = por %p145, %p146
      %p148 = scmp.ne.s32.totalorder %s139, %s140
      %p149 = scmp.eq.s32.totalorder %s22, 0
      %p150 = por %p148, %p149
      %p151 = scmp.ne.s32.totalorder %s139, %s140
      %p152 = scmp.eq.s32.totalorder %s23, 1
      %p153 = por %p151, %p152
      %p155 = scmp.ne.s32.totalorder %s140, %s154
      %p156 = scmp.eq.s32.totalorder %s23, 0
      %p157 = por %p155, %p156
      %s159 = sadd.s32 %s158, 1
      %p162 = scmp.eq.s32.totalorder %s17, 1
      %p163 = scmp.ne.s32.totalorder %s158, %s160
      %p164 = scmp.eq.s32.totalorder %s17, 0
      %p165 = por %p163, %p164
      %p166 = scmp.ne.s32.totalorder %s158, %s160
      %p167 = scmp.eq.s32.totalorder %s22, 1
      %p168 = por %p166, %p167
      %p169 = scmp.ne.s32.totalorder %s160, %s161
      %p170 = scmp.eq.s32.totalorder %s22, 0
      %p171 = por %p169, %p170
      %p172 = scmp.ne.s32.totalorder %s160, %s161
      %p173 = scmp.eq.s32.totalorder %s23, 1
      %p174 = por %p172, %p173
      %p176 = scmp.ne.s32.totalorder %s161, %s175
      %p177 = scmp.eq.s32.totalorder %s23, 0
      %p178 = por %p176, %p177
      %s180 = sadd.s32 %s179, 1
      %p183 = scmp.eq.s32.totalorder %s17, 1
      %p184 = scmp.ne.s32.totalorder %s179, %s181
      %p185 = scmp.eq.s32.totalorder %s17, 0
      %p186 = por %p184, %p185
      %p187 = scmp.ne.s32.totalorder %s179, %s181
      %p188 = scmp.eq.s32.totalorder %s22, 1
      %p189 = por %p187, %p188
      %p190 = scmp.ne.s32.totalorder %s181, %s182
      %p191 = scmp.eq.s32.totalorder %s22, 0
      %p192 = por %p190, %p191
      %p193 = scmp.ne.s32.totalorder %s181, %s182
      %p194 = scmp.eq.s32.totalorder %s23, 1
      %p195 = por %p193, %p194
      %p197 = scmp.ne.s32.totalorder %s182, %s196
      %p198 = scmp.eq.s32.totalorder %s23, 0
      %p199 = por %p197, %p198
      %s200 = sadd.s32 %s24, %s25
      %s201 = sadd.s32 %s43, %s39
      %s202 = ssub.s32 %s200, %s201
      %p203 = scmp.eq.s32.totalorder %s202, 0
      %s205 = sadd.s32 %s204, 1
      %s206 = scalar_select %p203, %s204, %s205
      %p209 = pneg %p203
      %p210 = scmp.eq.s32.totalorder %s17, 1
      %p211 = por %p209, %p210
      %p212 = scmp.ne.s32.totalorder %s204, %s207
      %p213 = scmp.eq.s32.totalorder %s17, 0
      %p214 = por %p212, %p213
      %p215 = scmp.ne.s32.totalorder %s204, %s207
      %p216 = scmp.eq.s32.totalorder %s22, 1
      %p217 = por %p215, %p216
      %p218 = scmp.ne.s32.totalorder %s207, %s208
      %p219 = scmp.eq.s32.totalorder %s22, 0
      %p220 = por %p218, %p219
      %p221 = scmp.ne.s32.totalorder %s207, %s208
      %p222 = scmp.eq.s32.totalorder %s23, 1
      %p223 = por %p221, %p222
      %p225 = scmp.ne.s32.totalorder %s208, %s224
      %p226 = scmp.eq.s32.totalorder %s23, 0
      %p227 = por %p225, %p226
      %p228 = scmp.le.s32.totalorder 1, %s17
      %p229 = scmp.lt.s32.totalorder %s17, 3
      %p230 = pnand %p228, %p229
      %p231 = pneg %p230
      // Predicated region
      $region9: #{_lambda_.2} parent=5 // pred_check
        _
      $region10: #{_lambda_.2} parent=5 // pred_check_branch
        %233 = sbr.rel (%p230) target = $region12
      $region11: #{_lambda_.2} parent=5 // pred_region
        %s234 = ssub.s32 %s17, 1
        // Predicated region
        $region13: #{_lambda_.2} parent=11 // pred_check
          %p235 = pneg %p87
        $region14: #{_lambda_.2} parent=11 // pred_check_branch
          %237 = sbr.rel (%p235) target = $region16
        $region15: #{_lambda_.2} parent=11 // pred_region
          %s239 = ssub.s32 32, 32
          %240 = vsyncadd [#allocation3], %s239
          %s242 = sshll.u32 [#allocation2], 4
          %s243 = int_to_ptr.vmem [resolvable:$true] %s242
          %245 = dma.hbm_to_vmem [thread:$0]  %s1, 32, %s243, [#allocation3]
        $region16: #{_lambda_.2} parent=11 // pred_fallthru
          _
        // Predicated region
        $region17: #{_lambda_.2} parent=11 // pred_check
          %p246 = pneg %p108
        $region18: #{_lambda_.2} parent=11 // pred_check_branch
          %248 = sbr.rel (%p246) target = $region20
        $region19: #{_lambda_.2} parent=11 // pred_region
          %s250 = ssub.s32 16, 16
          %251 = vsyncadd [#allocation5], %s250
          %s253 = sshll.u32 [#allocation4], 4
          %s254 = int_to_ptr.vmem [resolvable:$true] %s253
          %256 = dma.hbm_to_vmem [thread:$0]  %s2, 16, %s254, [#allocation5]
        $region20: #{_lambda_.2} parent=11 // pred_fallthru
          _
        // Predicated region
        $region21: #{_lambda_.2} parent=11 // pred_check
          %p257 = pneg %p129
        $region22: #{_lambda_.2} parent=11 // pred_check_branch
          %259 = sbr.rel (%p257) target = $region24
        $region23: #{_lambda_.2} parent=11 // pred_region
          %s261 = ssub.s32 512, 512
          %262 = vsyncadd [#allocation5], %s261
          %s263 = sshll.u32 [#allocation6], 4
          %s264 = int_to_ptr.vmem [resolvable:$true] %s263
          %269 = dma.hbm_to_vmem [thread:$0]  %s3, 512, %s264, [#allocation5], 64, 64, 4
        $region24: #{_lambda_.2} parent=11 // pred_fallthru
          _
        // Predicated region
        $region25: #{_lambda_.2} parent=11 // pred_check
          %p270 = pneg %p150
        $region26: #{_lambda_.2} parent=11 // pred_check_branch
          %272 = sbr.rel (%p270) target = $region28
        $region27: #{_lambda_.2} parent=11 // pred_region
          %s274 = ssub.s32 16, 16
          %275 = vsyncadd [#allocation8], %s274
          %s277 = sshll.u32 [#allocation7], 4
          %s278 = int_to_ptr.vmem [resolvable:$true] %s277
          %280 = dma.hbm_to_vmem [thread:$0]  %s4, 16, %s278, [#allocation8]
        $region28: #{_lambda_.2} parent=11 // pred_fallthru
          _
        // Predicated region
        $region29: #{_lambda_.2} parent=11 // pred_check
          %p281 = pneg %p171
        $region30: #{_lambda_.2} parent=11 // pred_check_branch
          %283 = sbr.rel (%p281) target = $region32
        $region31: #{_lambda_.2} parent=11 // pred_region
          %s285 = ssub.s32 8192, 8192
          %286 = vsyncadd [#allocation8], %s285
          %s287 = sshll.u32 [#allocation9], 4
          %s288 = int_to_ptr.vmem [resolvable:$true] %s287
          %293 = dma.hbm_to_vmem [thread:$0]  %s5, 8192, %s288, [#allocation8], 512, 512, 32
        $region32: #{_lambda_.2} parent=11 // pred_fallthru
          _
        // Predicated region
        $region33: #{_lambda_.2} parent=11 // pred_check
          %p294 = pneg %p192
        $region34: #{_lambda_.2} parent=11 // pred_check_branch
          %296 = sbr.rel (%p294) target = $region36
        $region35: #{_lambda_.2} parent=11 // pred_region
          %s298 = ssub.s32 128, 128
          %299 = vsyncadd [#allocation11], %s298
          %s301 = sshll.u32 [#allocation10], 4
          %s302 = int_to_ptr.vmem [resolvable:$true] %s301
          %304 = dma.hbm_to_vmem [thread:$0]  %s6, 128, %s302, [#allocation11]
        $region36: #{_lambda_.2} parent=11 // pred_fallthru
          _
      $region12: #{_lambda_.2} parent=5 // pred_fallthru
        _
      %p305 = scmp.lt.s32.totalorder %s17, 2
      // Predicated region
      $region37: #{_lambda_.2} parent=5 // pred_check
        %p306 = pneg %p305
      $region38: #{_lambda_.2} parent=5 // pred_check_branch
        %308 = sbr.rel (%p306) target = $region40
      $region39: #{_lambda_.2} parent=5 // pred_region
        // Predicated region
        $region41: #{_lambda_.2} parent=39 // pred_check
          %p309 = pneg %p60
        $region42: #{_lambda_.2} parent=39 // pred_check_branch
          %311 = sbr.rel (%p309) target = $region44
        $region43: #{_lambda_.2} parent=39 // pred_region
          %s312 = sadd.s32 %s25, %s26
          %s313 = smul.u32 2, %s312
          %p314 = scmp.lt.s32.totalorder %s24, 1
          %s315 = scalar_select %p314, %s24, 1
          %p316 = scmp.lt.s32.totalorder %s313, 1
          %s317 = scalar_select %p316, %s313, 1
          %s318 = smul.addr %s315, 2
          %s319 = sadd.s32 %s317, %s318
          %s320 = smul.addr %s319, 4
          %s321 = scalar_lea.vmem %s0, %s320
          %s322 = sadd.s32 %s25, %s26
          %s323 = smul.u32 2, %s322
        $region44: #{_lambda_.2} parent=39 // pred_fallthru
          _
      $region40: #{_lambda_.2} parent=5 // pred_fallthru
        _
      %p324 = scmp.le.s32.totalorder 1, %s17
      %p325 = scmp.lt.s32.totalorder %s17, 3
      %p326 = pnand %p324, %p325
      %p327 = pneg %p326
      // Predicated region
      $region45: #{_lambda_.2} parent=5 // pred_check
        _
      $region46: #{_lambda_.2} parent=5 // pred_check_branch
        %329 = sbr.rel (%p326) target = $region48
      $region47: #{_lambda_.2} parent=5 // pred_region
        %s330 = ssub.s32 %s17, 1
        // Predicated region
        $region49: #{_lambda_.2} parent=47 // pred_check
          %p331 = pneg %p87
        $region50: #{_lambda_.2} parent=47 // pred_check_branch
          %333 = sbr.rel (%p331) target = $region52
        $region51: #{_lambda_.2} parent=47 // pred_region
          %334 = dma.done [#allocation3], 32
        $region52: #{_lambda_.2} parent=47 // pred_fallthru
          _
        // Predicated region
        $region53: #{_lambda_.2} parent=47 // pred_check
          %p335 = pneg %p108
        $region54: #{_lambda_.2} parent=47 // pred_check_branch
          %337 = sbr.rel (%p335) target = $region56
        $region55: #{_lambda_.2} parent=47 // pred_region
          %338 = dma.done [#allocation5], 16
        $region56: #{_lambda_.2} parent=47 // pred_fallthru
          _
        // Predicated region
        $region57: #{_lambda_.2} parent=47 // pred_check
          %p339 = pneg %p129
        $region58: #{_lambda_.2} parent=47 // pred_check_branch
          %341 = sbr.rel (%p339) target = $region60
        $region59: #{_lambda_.2} parent=47 // pred_region
          %342 = dma.done [#allocation5], 512
        $region60: #{_lambda_.2} parent=47 // pred_fallthru
          _
        // Predicated region
        $region61: #{_lambda_.2} parent=47 // pred_check
          %p343 = pneg %p150
        $region62: #{_lambda_.2} parent=47 // pred_check_branch
          %345 = sbr.rel (%p343) target = $region64
        $region63: #{_lambda_.2} parent=47 // pred_region
          %346 = dma.done [#allocation8], 16
        $region64: #{_lambda_.2} parent=47 // pred_fallthru
          _
        // Predicated region
        $region65: #{_lambda_.2} parent=47 // pred_check
          %p347 = pneg %p171
        $region66: #{_lambda_.2} parent=47 // pred_check_branch
          %349 = sbr.rel (%p347) target = $region68
        $region67: #{_lambda_.2} parent=47 // pred_region
          %350 = dma.done [#allocation8], 8192
        $region68: #{_lambda_.2} parent=47 // pred_fallthru
          _
        // Predicated region
        $region69: #{_lambda_.2} parent=47 // pred_check
          %p351 = pneg %p192
        $region70: #{_lambda_.2} parent=47 // pred_check_branch
          %353 = sbr.rel (%p351) target = $region72
        $region71: #{_lambda_.2} parent=47 // pred_region
          %354 = dma.done [#allocation11], 128
        $region72: #{_lambda_.2} parent=47 // pred_fallthru
          _
        %s355 = sadd.s32 %s28, %s29
        %s356 = smul.u32 2, %s355
        %p357 = scmp.lt.s32.totalorder %s27, 1
        %s358 = scalar_select %p357, %s27, 1
        %p359 = scmp.lt.s32.totalorder %s356, 1
        %s360 = scalar_select %p359, %s356, 1
        %s361 = smul.addr %s358, 2
        %s362 = sadd.s32 %s360, %s361
        %s363 = smul.addr %s362, 4
        %s364 = scalar_lea.vmem %s0, %s363
        %p365 = pneg %p66
        %p366 = pneg %p63
        %p367 = pneg %p87
        %p368 = pneg %p84
        %p369 = pneg %p108
        %p370 = pneg %p105
        %p371 = pneg %p129
        %p372 = pneg %p126
        %p373 = pneg %p150
        %p374 = pneg %p147
        %p375 = pneg %p171
        %p376 = pneg %p168
        %p377 = pneg %p192
        %p378 = pneg %p189
        %p379 = pneg %p220
        %p380 = pneg %p217
        %s381 = sadd.s32 %s27, %s28
        %p382 = scmp.lt.s32.totalorder %s381, 1
        %s383 = scalar_select %p382, %s381, 1
        %s384 = smul.addr %s383, 8
        %s385 = scalar_lea.vmem %s7, %s384
        %s386 = sadd.s32 %s28, %s29
        %s387 = smul.u32 2, %s386
        %p388 = scmp.lt.s32.totalorder %s27, 1
        %s389 = scalar_select %p388, %s27, 1
        %p390 = scmp.lt.s32.totalorder %s387, 1
        %s391 = scalar_select %p390, %s387, 1
        %s392 = smul.addr %s389, 2
        %s393 = sadd.s32 %s391, %s392
        %s394 = smul.addr %s393, 4
        %s395 = scalar_lea.vmem %s0, %s394
        %s396 = sadd.s32 %s28, %s29
        %s397 = smul.u32 2, %s396
        %s398 = sadd.s32 %s27, %s28
        %p399 = scmp.lt.s32.totalorder %s398, 1
        %s400 = scalar_select %p399, %s398, 1
        %s401 = smul.addr %s400, 8
        %s402 = scalar_lea.vmem %s7, %s401
        %s403 = sadd.s32 %s27, %s28
        %p405 = scmp.eq.s32.totalorder %s29, 0
        // Predicated region
        $region73: #{_lambda_.2} parent=47 // pred_check
          %p406 = pneg %p405
        $region74: #{_lambda_.2} parent=47 // pred_check_branch
          %408 = sbr.rel (%p406) target = $region76
        $region75: #{_lambda_.2} parent=47 // pred_region
          %409 = vst [vmem:[%s402] sm:$0xff] -inf
        $region76: #{_lambda_.2} parent=47 // pred_fallthru
          _
        %v410 = vld [vmem:[%s395] sm:$0xf]
        %v411 = vld [vmem:[%s395 + $0x4] sm:$0xf]
        %v412 = vld [vmem:[#allocation2] sm:$0x3]
        %v413 = vld [vmem:[#allocation4] sm:$0x1]
        %v415 = vlaneseq
        %v416 = vshrl.u32 %v415, 7
        %v417 = vsub.s32 0, %v416
        %v418 = vrot.slane %v413, %v417
        %v422 = vunpack.c.l.b16 %v410
        %v423 = vunpack.c.l.b16 %v411
        %v424 = vpack.c.b16 %v423, %v422
        %vm425 = vcmask 31744
        %v427 = vsel %vm425, %v424, 0
        %vm429 = vcmask 1041408
        %v431 = vsel %vm429, %v412, 0
        %433 = vmatprep.subr.bf16.mxu0 0
        %434 = vmatpush1.bf16.msra.mxu0 0
        %435 = vmatprep.subr.bf16.mxu0 0
        %436 = vmatpush1.bf16.msra.mxu0 0
        %437 = vmatprep.subr.bf16.mxu0 0
        %438 = vmatpush1.bf16.msra.mxu0 0
        %439 = vmatprep.subr.bf16.mxu0 0
        %440 = vmatpush1.bf16.msra.mxu0 0
        %441 = vmatprep.subr.bf16.mxu0 0
        %442 = vmatpush1.bf16.msra.mxu0 0
        %443 = vmatprep.subr.bf16.mxu0 0
        %444 = vmatpush1.bf16.msra.mxu0 0
        %445 = vmatprep.subr.bf16.mxu0 0
        %446 = vmatpush1.bf16.msra.mxu0 0
        %447 = vmatprep.subr.bf16.mxu0 0
        %448 = vmatpush1.bf16.msra.mxu0 %v431
        %449 = vmatprep.subr.bf16.mxu0 0
        %450 = vmatpush2.bf16.msra.mxu0 0
        %451 = vmatprep.subr.bf16.mxu0 0
        %452 = vmatpush2.bf16.msra.mxu0 0
        %453 = vmatprep.subr.bf16.mxu0 0
        %454 = vmatpush2.bf16.msra.mxu0 0
        %455 = vmatprep.subr.bf16.mxu0 0
        %456 = vmatpush2.bf16.msra.mxu0 0
        %457 = vmatprep.subr.bf16.mxu0 0
        %458 = vmatpush2.bf16.msra.mxu0 0
        %459 = vmatprep.subr.bf16.mxu0 0
        %460 = vmatpush2.bf16.msra.mxu0 0
        %461 = vmatprep.subr.bf16.mxu0 0
        %462 = vmatpush2.bf16.msra.mxu0 0
        %463 = vmatprep.subr.bf16.mxu0 0
        %464 = vmatpush2.bf16.msra.mxu0 0
        %465 = vmatprep.mubr.bf16.mxu0 0
        %466 = vmatmul.mubr.bf16.gmra.mxu0 %v427
        %v467 = vpop.f32.mrf.mxu0
        %v468 = vadd.f32 %v418, %v467
        %v469 = vpop.f32.mrf.mxu0
        %v470 = vpop.f32.mrf.mxu0
        %v471 = vadd.f32 %v418, %v470
        %v472 = vpop.f32.mrf.mxu0
        %473 = vdwg.mxu0
        %v474 = vmax.f32 %v468, 0.0
        %v475 = vmax.f32 %v471, 0.0
        %v476 = vpack.c.bf16 %v475, %v474
        %v477 = vld [vmem:[#allocation6] sm:$0xf]
        %v478 = vld [vmem:[#allocation6 + $0x4] sm:$0xf]
        %v479 = vld [vmem:[#allocation6 + $0x8] sm:$0xf]
        %v480 = vld [vmem:[#allocation6 + $0xc] sm:$0xf]
        %v481 = vld [vmem:[#allocation6 + $0x10] sm:$0xf]
        %v482 = vld [vmem:[#allocation6 + $0x14] sm:$0xf]
        %v483 = vld [vmem:[#allocation6 + $0x18] sm:$0xf]
        %v484 = vld [vmem:[#allocation6 + $0x1c] sm:$0xf]
        %v485 = vld [vmem:[#allocation7] sm:$0x1]
        %v487 = vlaneseq
        %v488 = vshrl.u32 %v487, 7
        %v489 = vsub.s32 0, %v488
        %v490 = vrot.slane %v485, %v489
        %v500 = vunpack.c.l.b16 %v477
        %v501 = vunpack.c.l.b16 %v478
        %v502 = vunpack.c.l.b16 %v479
        %v503 = vunpack.c.l.b16 %v480
        %v504 = vunpack.c.l.b16 %v481
        %v505 = vunpack.c.l.b16 %v482
        %v506 = vunpack.c.l.b16 %v483
        %v507 = vunpack.c.l.b16 %v484
        %v508 = vpack.c.b16 %v501, %v500
        %v509 = vpack.c.b16 %v503, %v502
        %v510 = vpack.c.b16 %v505, %v504
        %v511 = vpack.c.b16 %v507, %v506
        %vm516 = vcmask 523264
        %v518 = vsel %vm516, %v476, 0
        %520 = vmatprep.subr.bf16.mxu0 0
        %521 = vmatpush1.bf16.msra.mxu0 0
        %522 = vmatprep.subr.bf16.mxu0 0
        %523 = vmatpush1.bf16.msra.mxu0 0
        %524 = vmatprep.subr.bf16.mxu0 0
        %525 = vmatpush1.bf16.msra.mxu0 0
        %526 = vmatprep.subr.bf16.mxu0 0
        %527 = vmatpush1.bf16.msra.mxu0 0
        %528 = vmatprep.subr.bf16.mxu0 0
        %529 = vmatpush1.bf16.msra.mxu0 %v511
        %530 = vmatprep.subr.bf16.mxu0 0
        %531 = vmatpush1.bf16.msra.mxu0 %v510
        %532 = vmatprep.subr.bf16.mxu0 0
        %533 = vmatpush1.bf16.msra.mxu0 %v509
        %534 = vmatprep.subr.bf16.mxu0 0
        %535 = vmatpush1.bf16.msra.mxu0 %v508
        %536 = vmatprep.subr.bf16.mxu0 0
        %537 = vmatpush2.bf16.msra.mxu0 0
        %538 = vmatprep.subr.bf16.mxu0 0
        %539 = vmatpush2.bf16.msra.mxu0 0
        %540 = vmatprep.subr.bf16.mxu0 0
        %541 = vmatpush2.bf16.msra.mxu0 0
        %542 = vmatprep.subr.bf16.mxu0 0
        %543 = vmatpush2.bf16.msra.mxu0 0
        %544 = vmatprep.subr.bf16.mxu0 0
        %545 = vmatpush2.bf16.msra.mxu0 0
        %546 = vmatprep.subr.bf16.mxu0 0
        %547 = vmatpush2.bf16.msra.mxu0 0
        %548 = vmatprep.subr.bf16.mxu0 0
        %549 = vmatpush2.bf16.msra.mxu0 0
        %550 = vmatprep.subr.bf16.mxu0 0
        %551 = vmatpush2.bf16.msra.mxu0 0
        %552 = vmatprep.mubr.bf16.mxu0 0
        %553 = vmatmul.mubr.bf16.gmra.mxu0 %v518
        %v554 = vpop.f32.mrf.mxu0
        %v555 = vadd.f32 %v490, %v554
        %v556 = vpop.f32.mrf.mxu0
        %v557 = vpop.f32.mrf.mxu0
        %v558 = vadd.f32 %v490, %v557
        %v559 = vpop.f32.mrf.mxu0
        %560 = vdwg.mxu0
        %v561 = vmax.f32 %v555, 0.0
        %v562 = vmax.f32 %v558, 0.0
        %v563 = vpack.c.bf16 %v562, %v561
        %v564 = vld [vmem:[#allocation9] sm:$0xff]
        %v565 = vld [vmem:[#allocation9 + $0x8] sm:$0xff]
        %v566 = vld [vmem:[#allocation9 + $0x10] sm:$0xff]
        %v567 = vld [vmem:[#allocation9 + $0x18] sm:$0xff]
        %v568 = vld [vmem:[#allocation9 + $0x20] sm:$0xff]
        %v569 = vld [vmem:[#allocation9 + $0x28] sm:$0xff]
        %v570 = vld [vmem:[#allocation9 + $0x30] sm:$0xff]
        %v571 = vld [vmem:[#allocation9 + $0x38] sm:$0xff]
        %v572 = vld [vmem:[#allocation9 + $0x40] sm:$0xff]
        %v573 = vld [vmem:[#allocation9 + $0x48] sm:$0xff]
        %v574 = vld [vmem:[#allocation9 + $0x50] sm:$0xff]
        %v575 = vld [vmem:[#allocation9 + $0x58] sm:$0xff]
        %v576 = vld [vmem:[#allocation9 + $0x60] sm:$0xff]
        %v577 = vld [vmem:[#allocation9 + $0x68] sm:$0xff]
        %v578 = vld [vmem:[#allocation9 + $0x70] sm:$0xff]
        %v579 = vld [vmem:[#allocation9 + $0x78] sm:$0xff]
        %v580 = vld [vmem:[#allocation9 + $0x80] sm:$0xff]
        %v581 = vld [vmem:[#allocation9 + $0x88] sm:$0xff]
        %v582 = vld [vmem:[#allocation9 + $0x90] sm:$0xff]
        %v583 = vld [vmem:[#allocation9 + $0x98] sm:$0xff]
        %v584 = vld [vmem:[#allocation9 + $0xa0] sm:$0xff]
        %v585 = vld [vmem:[#allocation9 + $0xa8] sm:$0xff]
        %v586 = vld [vmem:[#allocation9 + $0xb0] sm:$0xff]
        %v587 = vld [vmem:[#allocation9 + $0xb8] sm:$0xff]
        %v588 = vld [vmem:[#allocation9 + $0xc0] sm:$0xff]
        %v589 = vld [vmem:[#allocation9 + $0xc8] sm:$0xff]
        %v590 = vld [vmem:[#allocation9 + $0xd0] sm:$0xff]
        %v591 = vld [vmem:[#allocation9 + $0xd8] sm:$0xff]
        %v592 = vld [vmem:[#allocation9 + $0xe0] sm:$0xff]
        %v593 = vld [vmem:[#allocation9 + $0xe8] sm:$0xff]
        %v594 = vld [vmem:[#allocation9 + $0xf0] sm:$0xff]
        %v595 = vld [vmem:[#allocation9 + $0xf8] sm:$0xff]
        %v596 = vld [vmem:[#allocation9 + $0x100] sm:$0xff]
        %v597 = vld [vmem:[#allocation9 + $0x108] sm:$0xff]
        %v598 = vld [vmem:[#allocation9 + $0x110] sm:$0xff]
        %v599 = vld [vmem:[#allocation9 + $0x118] sm:$0xff]
        %v600 = vld [vmem:[#allocation9 + $0x120] sm:$0xff]
        %v601 = vld [vmem:[#allocation9 + $0x128] sm:$0xff]
        %v602 = vld [vmem:[#allocation9 + $0x130] sm:$0xff]
        %v603 = vld [vmem:[#allocation9 + $0x138] sm:$0xff]
        %v604 = vld [vmem:[#allocation9 + $0x140] sm:$0xff]
        %v605 = vld [vmem:[#allocation9 + $0x148] sm:$0xff]
        %v606 = vld [vmem:[#allocation9 + $0x150] sm:$0xff]
        %v607 = vld [vmem:[#allocation9 + $0x158] sm:$0xff]
        %v608 = vld [vmem:[#allocation9 + $0x160] sm:$0xff]
        %v609 = vld [vmem:[#allocation9 + $0x168] sm:$0xff]
        %v610 = vld [vmem:[#allocation9 + $0x170] sm:$0xff]
        %v611 = vld [vmem:[#allocation9 + $0x178] sm:$0xff]
        %v612 = vld [vmem:[#allocation9 + $0x180] sm:$0xff]
        %v613 = vld [vmem:[#allocation9 + $0x188] sm:$0xff]
        %v614 = vld [vmem:[#allocation9 + $0x190] sm:$0xff]
        %v615 = vld [vmem:[#allocation9 + $0x198] sm:$0xff]
        %v616 = vld [vmem:[#allocation9 + $0x1a0] sm:$0xff]
        %v617 = vld [vmem:[#allocation9 + $0x1a8] sm:$0xff]
        %v618 = vld [vmem:[#allocation9 + $0x1b0] sm:$0xff]
        %v619 = vld [vmem:[#allocation9 + $0x1b8] sm:$0xff]
        %v620 = vld [vmem:[#allocation9 + $0x1c0] sm:$0xff]
        %v621 = vld [vmem:[#allocation9 + $0x1c8] sm:$0xff]
        %v622 = vld [vmem:[#allocation9 + $0x1d0] sm:$0xff]
        %v623 = vld [vmem:[#allocation9 + $0x1d8] sm:$0xff]
        %v624 = vld [vmem:[#allocation9 + $0x1e0] sm:$0xff]
        %v625 = vld [vmem:[#allocation9 + $0x1e8] sm:$0xff]
        %v626 = vld [vmem:[#allocation9 + $0x1f0] sm:$0xff]
        %v627 = vld [vmem:[#allocation9 + $0x1f8] sm:$0xff]
        %v692 = vunpack.c.l.b16 %v564
        %v693 = vunpack.c.h.b16 %v564
        %v694 = vunpack.c.l.b16 %v565
        %v695 = vunpack.c.h.b16 %v565
        %v696 = vunpack.c.l.b16 %v566
        %v697 = vunpack.c.h.b16 %v566
        %v698 = vunpack.c.l.b16 %v567
        %v699 = vunpack.c.h.b16 %v567
        %v700 = vunpack.c.l.b16 %v568
        %v701 = vunpack.c.h.b16 %v568
        %v702 = vunpack.c.l.b16 %v569
        %v703 = vunpack.c.h.b16 %v569
        %v704 = vunpack.c.l.b16 %v570
        %v705 = vunpack.c.h.b16 %v570
        %v706 = vunpack.c.l.b16 %v571
        %v707 = vunpack.c.h.b16 %v571
        %v708 = vunpack.c.l.b16 %v572
        %v709 = vunpack.c.h.b16 %v572
        %v710 = vunpack.c.l.b16 %v573
        %v711 = vunpack.c.h.b16 %v573
        %v712 = vunpack.c.l.b16 %v574
        %v713 = vunpack.c.h.b16 %v574
        %v714 = vunpack.c.l.b16 %v575
        %v715 = vunpack.c.h.b16 %v575
        %v716 = vunpack.c.l.b16 %v576
        %v717 = vunpack.c.h.b16 %v576
        %v718 = vunpack.c.l.b16 %v577
        %v719 = vunpack.c.h.b16 %v577
        %v720 = vunpack.c.l.b16 %v578
        %v721 = vunpack.c.h.b16 %v578
        %v722 = vunpack.c.l.b16 %v579
        %v723 = vunpack.c.h.b16 %v579
        %v724 = vunpack.c.l.b16 %v580
        %v725 = vunpack.c.h.b16 %v580
        %v726 = vunpack.c.l.b16 %v581
        %v727 = vunpack.c.h.b16 %v581
        %v728 = vunpack.c.l.b16 %v582
        %v729 = vunpack.c.h.b16 %v582
        %v730 = vunpack.c.l.b16 %v583
        %v731 = vunpack.c.h.b16 %v583
        %v732 = vunpack.c.l.b16 %v584
        %v733 = vunpack.c.h.b16 %v584
        %v734 = vunpack.c.l.b16 %v585
        %v735 = vunpack.c.h.b16 %v585
        %v736 = vunpack.c.l.b16 %v586
        %v737 = vunpack.c.h.b16 %v586
        %v738 = vunpack.c.l.b16 %v587
        %v739 = vunpack.c.h.b16 %v587
        %v740 = vunpack.c.l.b16 %v588
        %v741 = vunpack.c.h.b16 %v588
        %v742 = vunpack.c.l.b16 %v589
        %v743 = vunpack.c.h.b16 %v589
        %v744 = vunpack.c.l.b16 %v590
        %v745 = vunpack.c.h.b16 %v590
        %v746 = vunpack.c.l.b16 %v591
        %v747 = vunpack.c.h.b16 %v591
        %v748 = vunpack.c.l.b16 %v592
        %v749 = vunpack.c.h.b16 %v592
        %v750 = vunpack.c.l.b16 %v593
        %v751 = vunpack.c.h.b16 %v593
        %v752 = vunpack.c.l.b16 %v594
        %v753 = vunpack.c.h.b16 %v594
        %v754 = vunpack.c.l.b16 %v595
        %v755 = vunpack.c.h.b16 %v595
        %v756 = vunpack.c.l.b16 %v596
        %v757 = vunpack.c.h.b16 %v596
        %v758 = vunpack.c.l.b16 %v597
        %v759 = vunpack.c.h.b16 %v597
        %v760 = vunpack.c.l.b16 %v598
        %v761 = vunpack.c.h.b16 %v598
        %v762 = vunpack.c.l.b16 %v599
        %v763 = vunpack.c.h.b16 %v599
        %v764 = vunpack.c.l.b16 %v600
        %v765 = vunpack.c.h.b16 %v600
        %v766 = vunpack.c.l.b16 %v601
        %v767 = vunpack.c.h.b16 %v601
        %v768 = vunpack.c.l.b16 %v602
        %v769 = vunpack.c.h.b16 %v602
        %v770 = vunpack.c.l.b16 %v603
        %v771 = vunpack.c.h.b16 %v603
        %v772 = vunpack.c.l.b16 %v604
        %v773 = vunpack.c.h.b16 %v604
        %v774 = vunpack.c.l.b16 %v605
        %v775 = vunpack.c.h.b16 %v605
        %v776 = vunpack.c.l.b16 %v606
        %v777 = vunpack.c.h.b16 %v606
        %v778 = vunpack.c.l.b16 %v607
        %v779 = vunpack.c.h.b16 %v607
        %v780 = vunpack.c.l.b16 %v608
        %v781 = vunpack.c.h.b16 %v608
        %v782 = vunpack.c.l.b16 %v609
        %v783 = vunpack.c.h.b16 %v609
        %v784 = vunpack.c.l.b16 %v610
        %v785 = vunpack.c.h.b16 %v610
        %v786 = vunpack.c.l.b16 %v611
        %v787 = vunpack.c.h.b16 %v611
        %v788 = vunpack.c.l.b16 %v612
        %v789 = vunpack.c.h.b16 %v612
        %v790 = vunpack.c.l.b16 %v613
        %v791 = vunpack.c.h.b16 %v613
        %v792 = vunpack.c.l.b16 %v614
        %v793 = vunpack.c.h.b16 %v614
        %v794 = vunpack.c.l.b16 %v615
        %v795 = vunpack.c.h.b16 %v615
        %v796 = vunpack.c.l.b16 %v616
        %v797 = vunpack.c.h.b16 %v616
        %v798 = vunpack.c.l.b16 %v617
        %v799 = vunpack.c.h.b16 %v617
        %v800 = vunpack.c.l.b16 %v618
        %v801 = vunpack.c.h.b16 %v618
        %v802 = vunpack.c.l.b16 %v619
        %v803 = vunpack.c.h.b16 %v619
        %v804 = vunpack.c.l.b16 %v620
        %v805 = vunpack.c.h.b16 %v620
        %v806 = vunpack.c.l.b16 %v621
        %v807 = vunpack.c.h.b16 %v621
        %v808 = vunpack.c.l.b16 %v622
        %v809 = vunpack.c.h.b16 %v622
        %v810 = vunpack.c.l.b16 %v623
        %v811 = vunpack.c.h.b16 %v623
        %v812 = vunpack.c.l.b16 %v624
        %v813 = vunpack.c.h.b16 %v624
        %v814 = vunpack.c.l.b16 %v625
        %v815 = vunpack.c.h.b16 %v625
        %v816 = vunpack.c.l.b16 %v626
        %v817 = vunpack.c.h.b16 %v626
        %v818 = vunpack.c.l.b16 %v627
        %v819 = vunpack.c.h.b16 %v627
        %v820 = vpack.c.b16 %v700, %v692
        %v821 = vpack.c.b16 %v701, %v693
        %v822 = vpack.c.b16 %v702, %v694
        %v823 = vpack.c.b16 %v703, %v695
        %v824 = vpack.c.b16 %v704, %v696
        %v825 = vpack.c.b16 %v705, %v697
        %v826 = vpack.c.b16 %v706, %v698
        %v827 = vpack.c.b16 %v707, %v699
        %v828 = vpack.c.b16 %v716, %v708
        %v829 = vpack.c.b16 %v717, %v709
        %v830 = vpack.c.b16 %v718, %v710
        %v831 = vpack.c.b16 %v719, %v711
        %v832 = vpack.c.b16 %v720, %v712
        %v833 = vpack.c.b16 %v721, %v713
        %v834 = vpack.c.b16 %v722, %v714
        %v835 = vpack.c.b16 %v723, %v715
        %v836 = vpack.c.b16 %v732, %v724
        %v837 = vpack.c.b16 %v733, %v725
        %v838 = vpack.c.b16 %v734, %v726
        %v839 = vpack.c.b16 %v735, %v727
        %v840 = vpack.c.b16 %v736, %v728
        %v841 = vpack.c.b16 %v737, %v729
        %v842 = vpack.c.b16 %v738, %v730
        %v843 = vpack.c.b16 %v739, %v731
        %v844 = vpack.c.b16 %v748, %v740
        %v845 = vpack.c.b16 %v749, %v741
        %v846 = vpack.c.b16 %v750, %v742
        %v847 = vpack.c.b16 %v751, %v743
        %v848 = vpack.c.b16 %v752, %v744
        %v849 = vpack.c.b16 %v753, %v745
        %v850 = vpack.c.b16 %v754, %v746
        %v851 = vpack.c.b16 %v755, %v747
        %v852 = vpack.c.b16 %v764, %v756
        %v853 = vpack.c.b16 %v765, %v757
        %v854 = vpack.c.b16 %v766, %v758
        %v855 = vpack.c.b16 %v767, %v759
        %v856 = vpack.c.b16 %v768, %v760
        %v857 = vpack.c.b16 %v769, %v761
        %v858 = vpack.c.b16 %v770, %v762
        %v859 = vpack.c.b16 %v771, %v763
        %v860 = vpack.c.b16 %v780, %v772
        %v861 = vpack.c.b16 %v781, %v773
        %v862 = vpack.c.b16 %v782, %v774
        %v863 = vpack.c.b16 %v783, %v775
        %v864 = vpack.c.b16 %v784, %v776
        %v865 = vpack.c.b16 %v785, %v777
        %v866 = vpack.c.b16 %v786, %v778
        %v867 = vpack.c.b16 %v787, %v779
        %v868 = vpack.c.b16 %v796, %v788
        %v869 = vpack.c.b16 %v797, %v789
        %v870 = vpack.c.b16 %v798, %v790
        %v871 = vpack.c.b16 %v799, %v791
        %v872 = vpack.c.b16 %v800, %v792
        %v873 = vpack.c.b16 %v801, %v793
        %v874 = vpack.c.b16 %v802, %v794
        %v875 = vpack.c.b16 %v803, %v795
        %v876 = vpack.c.b16 %v812, %v804
        %v877 = vpack.c.b16 %v813, %v805
        %v878 = vpack.c.b16 %v814, %v806
        %v879 = vpack.c.b16 %v815, %v807
        %v880 = vpack.c.b16 %v816, %v808
        %v881 = vpack.c.b16 %v817, %v809
        %v882 = vpack.c.b16 %v818, %v810
        %v883 = vpack.c.b16 %v819, %v811
        %948 = vmatprep.subr.bf16.mxu0 %v877
        %949 = vmatpush1.bf16.msra.mxu0 %v876
        %950 = vmatprep.subr.bf16.mxu0 %v869
        %951 = vmatpush1.bf16.msra.mxu0 %v868
        %952 = vmatprep.subr.bf16.mxu0 %v861
        %953 = vmatpush1.bf16.msra.mxu0 %v860
        %954 = vmatprep.subr.bf16.mxu0 %v853
        %955 = vmatpush1.bf16.msra.mxu0 %v852
        %956 = vmatprep.subr.bf16.mxu0 %v845
        %957 = vmatpush1.bf16.msra.mxu0 %v844
        %958 = vmatprep.subr.bf16.mxu0 %v837
        %959 = vmatpush1.bf16.msra.mxu0 %v836
        %960 = vmatprep.subr.bf16.mxu0 %v829
        %961 = vmatpush1.bf16.msra.mxu0 %v828
        %962 = vmatprep.subr.bf16.mxu0 %v821
        %963 = vmatpush1.bf16.msra.mxu0 %v820
        %964 = vmatprep.subr.bf16.mxu0 0
        %965 = vmatpush2.bf16.msra.mxu0 0
        %966 = vmatprep.subr.bf16.mxu0 0
        %967 = vmatpush2.bf16.msra.mxu0 0
        %968 = vmatprep.subr.bf16.mxu0 0
        %969 = vmatpush2.bf16.msra.mxu0 0
        %970 = vmatprep.subr.bf16.mxu0 0
        %971 = vmatpush2.bf16.msra.mxu0 0
        %972 = vmatprep.subr.bf16.mxu0 0
        %973 = vmatpush2.bf16.msra.mxu0 0
        %974 = vmatprep.subr.bf16.mxu0 0
        %975 = vmatpush2.bf16.msra.mxu0 0
        %976 = vmatprep.subr.bf16.mxu0 0
        %977 = vmatpush2.bf16.msra.mxu0 0
        %978 = vmatprep.subr.bf16.mxu0 0
        %979 = vmatpush2.bf16.msra.mxu0 0
        %980 = vmatprep.mubr.bf16.mxu0 0
        %981 = vmatmul.mubr.bf16.gmra.mxu0 %v563
        %v982 = vpop.f32.mrf.mxu0
        %v983 = vadd.f32 0.0, %v982
        %v984 = vpop.f32.mrf.mxu0
        %v985 = vadd.f32 0.0, %v984
        %v986 = vpop.f32.mrf.mxu0
        %v987 = vadd.f32 0.0, %v986
        %v988 = vpop.f32.mrf.mxu0
        %v989 = vadd.f32 0.0, %v988
        %990 = vdwg.mxu0
        %991 = vmatprep.subr.bf16.mxu0 %v879
        %992 = vmatpush1.bf16.msra.mxu0 %v878
        %993 = vmatprep.subr.bf16.mxu0 %v871
        %994 = vmatpush1.bf16.msra.mxu0 %v870
        %995 = vmatprep.subr.bf16.mxu0 %v863
        %996 = vmatpush1.bf16.msra.mxu0 %v862
        %997 = vmatprep.subr.bf16.mxu0 %v855
        %998 = vmatpush1.bf16.msra.mxu0 %v854
        %999 = vmatprep.subr.bf16.mxu0 %v847
        %1000 = vmatpush1.bf16.msra.mxu0 %v846
        %1001 = vmatprep.subr.bf16.mxu0 %v839
        %1002 = vmatpush1.bf16.msra.mxu0 %v838
        %1003 = vmatprep.subr.bf16.mxu0 %v831
        %1004 = vmatpush1.bf16.msra.mxu0 %v830
        %1005 = vmatprep.subr.bf16.mxu0 %v823
        %1006 = vmatpush1.bf16.msra.mxu0 %v822
        %1007 = vmatprep.subr.bf16.mxu0 0
        %1008 = vmatpush2.bf16.msra.mxu0 0
        %1009 = vmatprep.subr.bf16.mxu0 0
        %1010 = vmatpush2.bf16.msra.mxu0 0
        %1011 = vmatprep.subr.bf16.mxu0 0
        %1012 = vmatpush2.bf16.msra.mxu0 0
        %1013 = vmatprep.subr.bf16.mxu0 0
        %1014 = vmatpush2.bf16.msra.mxu0 0
        %1015 = vmatprep.subr.bf16.mxu0 0
        %1016 = vmatpush2.bf16.msra.mxu0 0
        %1017 = vmatprep.subr.bf16.mxu0 0
        %1018 = vmatpush2.bf16.msra.mxu0 0
        %1019 = vmatprep.subr.bf16.mxu0 0
        %1020 = vmatpush2.bf16.msra.mxu0 0
        %1021 = vmatprep.subr.bf16.mxu0 0
        %1022 = vmatpush2.bf16.msra.mxu0 0
        %1023 = vmatprep.mubr.bf16.mxu0 0
        %1024 = vmatmul.mubr.bf16.gmra.mxu0 %v563
        %v1025 = vpop.f32.mrf.mxu0
        %v1026 = vadd.f32 0.0, %v1025
        %v1027 = vpop.f32.mrf.mxu0
        %v1028 = vadd.f32 0.0, %v1027
        %v1029 = vpop.f32.mrf.mxu0
        %v1030 = vadd.f32 0.0, %v1029
        %v1031 = vpop.f32.mrf.mxu0
        %v1032 = vadd.f32 0.0, %v1031
        %1033 = vdwg.mxu0
        %1034 = vmatprep.subr.bf16.mxu0 %v881
        %1035 = vmatpush1.bf16.msra.mxu0 %v880
        %1036 = vmatprep.subr.bf16.mxu0 %v873
        %1037 = vmatpush1.bf16.msra.mxu0 %v872
        %1038 = vmatprep.subr.bf16.mxu0 %v865
        %1039 = vmatpush1.bf16.msra.mxu0 %v864
        %1040 = vmatprep.subr.bf16.mxu0 %v857
        %1041 = vmatpush1.bf16.msra.mxu0 %v856
        %1042 = vmatprep.subr.bf16.mxu0 %v849
        %1043 = vmatpush1.bf16.msra.mxu0 %v848
        %1044 = vmatprep.subr.bf16.mxu0 %v841
        %1045 = vmatpush1.bf16.msra.mxu0 %v840
        %1046 = vmatprep.subr.bf16.mxu0 %v833
        %1047 = vmatpush1.bf16.msra.mxu0 %v832
        %1048 = vmatprep.subr.bf16.mxu0 %v825
        %1049 = vmatpush1.bf16.msra.mxu0 %v824
        %1050 = vmatprep.subr.bf16.mxu0 0
        %1051 = vmatpush2.bf16.msra.mxu0 0
        %1052 = vmatprep.subr.bf16.mxu0 0
        %1053 = vmatpush2.bf16.msra.mxu0 0
        %1054 = vmatprep.subr.bf16.mxu0 0
        %1055 = vmatpush2.bf16.msra.mxu0 0
        %1056 = vmatprep.subr.bf16.mxu0 0
        %1057 = vmatpush2.bf16.msra.mxu0 0
        %1058 = vmatprep.subr.bf16.mxu0 0
        %1059 = vmatpush2.bf16.msra.mxu0 0
        %1060 = vmatprep.subr.bf16.mxu0 0
        %1061 = vmatpush2.bf16.msra.mxu0 0
        %1062 = vmatprep.subr.bf16.mxu0 0
        %1063 = vmatpush2.bf16.msra.mxu0 0
        %1064 = vmatprep.subr.bf16.mxu0 0
        %1065 = vmatpush2.bf16.msra.mxu0 0
        %1066 = vmatprep.mubr.bf16.mxu0 0
        %1067 = vmatmul.mubr.bf16.gmra.mxu0 %v563
        %v1068 = vpop.f32.mrf.mxu0
        %v1069 = vadd.f32 0.0, %v1068
        %v1070 = vpop.f32.mrf.mxu0
        %v1071 = vadd.f32 0.0, %v1070
        %v1072 = vpop.f32.mrf.mxu0
        %v1073 = vadd.f32 0.0, %v1072
        %v1074 = vpop.f32.mrf.mxu0
        %v1075 = vadd.f32 0.0, %v1074
        %1076 = vdwg.mxu0
        %1077 = vmatprep.subr.bf16.mxu0 %v883
        %1078 = vmatpush1.bf16.msra.mxu0 %v882
        %1079 = vmatprep.subr.bf16.mxu0 %v875
        %1080 = vmatpush1.bf16.msra.mxu0 %v874
        %1081 = vmatprep.subr.bf16.mxu0 %v867
        %1082 = vmatpush1.bf16.msra.mxu0 %v866
        %1083 = vmatprep.subr.bf16.mxu0 %v859
        %1084 = vmatpush1.bf16.msra.mxu0 %v858
        %1085 = vmatprep.subr.bf16.mxu0 %v851
        %1086 = vmatpush1.bf16.msra.mxu0 %v850
        %1087 = vmatprep.subr.bf16.mxu0 %v843
        %1088 = vmatpush1.bf16.msra.mxu0 %v842
        %1089 = vmatprep.subr.bf16.mxu0 %v835
        %1090 = vmatpush1.bf16.msra.mxu0 %v834
        %1091 = vmatprep.subr.bf16.mxu0 %v827
        %1092 = vmatpush1.bf16.msra.mxu0 %v826
        %1093 = vmatprep.subr.bf16.mxu0 0
        %1094 = vmatpush2.bf16.msra.mxu0 0
        %1095 = vmatprep.subr.bf16.mxu0 0
        %1096 = vmatpush2.bf16.msra.mxu0 0
        %1097 = vmatprep.subr.bf16.mxu0 0
        %1098 = vmatpush2.bf16.msra.mxu0 0
        %1099 = vmatprep.subr.bf16.mxu0 0
        %1100 = vmatpush2.bf16.msra.mxu0 0
        %1101 = vmatprep.subr.bf16.mxu0 0
        %1102 = vmatpush2.bf16.msra.mxu0 0
        %1103 = vmatprep.subr.bf16.mxu0 0
        %1104 = vmatpush2.bf16.msra.mxu0 0
        %1105 = vmatprep.subr.bf16.mxu0 0
        %1106 = vmatpush2.bf16.msra.mxu0 0
        %1107 = vmatprep.subr.bf16.mxu0 0
        %1108 = vmatpush2.bf16.msra.mxu0 0
        %1109 = vmatprep.mubr.bf16.mxu0 0
        %1110 = vmatmul.mubr.bf16.gmra.mxu0 %v563
        %v1111 = vpop.f32.mrf.mxu0
        %v1112 = vadd.f32 0.0, %v1111
        %v1113 = vpop.f32.mrf.mxu0
        %v1114 = vadd.f32 0.0, %v1113
        %v1115 = vpop.f32.mrf.mxu0
        %v1116 = vadd.f32 0.0, %v1115
        %v1117 = vpop.f32.mrf.mxu0
        %v1118 = vadd.f32 0.0, %v1117
        %1119 = vdwg.mxu0
        %v1120 = vld [vmem:[%s402] sm:$0xff]
        %v1121 = vmax.f32 %v983, %v987
        %v1122 = vrot.slane %v1121, 4
        %v1123 = vmax.f32 %v1121, %v1122
        %v1124 = vrot.slane %v1123, 2
        %v1125 = vmax.f32 %v1123, %v1124
        %v1126 = vrot.slane %v1125, 1
        %v1127 = vmax.f32 %v1125, %v1126
        %v1128 = vmax.f32 %v985, %v989
        %v1129 = vrot.slane %v1128, 4
        %v1130 = vmax.f32 %v1128, %v1129
        %v1131 = vrot.slane %v1130, 2
        %v1132 = vmax.f32 %v1130, %v1131
        %v1133 = vrot.slane %v1132, 1
        %v1134 = vmax.f32 %v1132, %v1133
        %v1135 = vmax.f32 %v1026, %v1030
        %v1136 = vrot.slane %v1135, 4
        %v1137 = vmax.f32 %v1135, %v1136
        %v1138 = vrot.slane %v1137, 2
        %v1139 = vmax.f32 %v1137, %v1138
        %v1140 = vrot.slane %v1139, 1
        %v1141 = vmax.f32 %v1139, %v1140
        %v1142 = vmax.f32 %v1028, %v1032
        %v1143 = vrot.slane %v1142, 4
        %v1144 = vmax.f32 %v1142, %v1143
        %v1145 = vrot.slane %v1144, 2
        %v1146 = vmax.f32 %v1144, %v1145
        %v1147 = vrot.slane %v1146, 1
        %v1148 = vmax.f32 %v1146, %v1147
        %v1149 = vmax.f32 %v1069, %v1073
        %v1150 = vrot.slane %v1149, 4
        %v1151 = vmax.f32 %v1149, %v1150
        %v1152 = vrot.slane %v1151, 2
        %v1153 = vmax.f32 %v1151, %v1152
        %v1154 = vrot.slane %v1153, 1
        %v1155 = vmax.f32 %v1153, %v1154
        %v1156 = vmax.f32 %v1071, %v1075
        %v1157 = vrot.slane %v1156, 4
        %v1158 = vmax.f32 %v1156, %v1157
        %v1159 = vrot.slane %v1158, 2
        %v1160 = vmax.f32 %v1158, %v1159
        %v1161 = vrot.slane %v1160, 1
        %v1162 = vmax.f32 %v1160, %v1161
        %v1163 = vmax.f32 %v1112, %v1116
        %v1164 = vrot.slane %v1163, 4
        %v1165 = vmax.f32 %v1163, %v1164
        %v1166 = vrot.slane %v1165, 2
        %v1167 = vmax.f32 %v1165, %v1166
        %v1168 = vrot.slane %v1167, 1
        %v1169 = vmax.f32 %v1167, %v1168
        %v1170 = vmax.f32 %v1114, %v1118
        %v1171 = vrot.slane %v1170, 4
        %v1172 = vmax.f32 %v1170, %v1171
        %v1173 = vrot.slane %v1172, 2
        %v1174 = vmax.f32 %v1172, %v1173
        %v1175 = vrot.slane %v1174, 1
        %v1176 = vmax.f32 %v1174, %v1175
        %v1185 = vcombine.low %v1127, %v1134
        %v1186 = vcombine.low %v1141, %v1148
        %v1187 = vcombine.low %v1155, %v1162
        %v1188 = vcombine.low %v1169, %v1176
        %v1190 = vunpack.c.l.s4 1966171168
        %v1191 = vunpack.c.0.s8 %v1190
        %v1192 = vlaneseq
        %v1193 = vshrl.u32 %v1192, 7
        %v1194 = vsub.s32 %v1191, %v1193
        %v1195 = vrot.slane %v1185, %v1194
        %v1197 = vunpack.c.l.s4 1966171168
        %v1198 = vunpack.c.0.s8 %v1197
        %v1199 = vlaneseq
        %v1200 = vshrl.u32 %v1199, 7
        %v1201 = vsub.s32 %v1198, %v1200
        %v1202 = vrot.slane %v1186, %v1201
        %v1204 = vunpack.c.l.s4 1966171168
        %v1205 = vunpack.c.0.s8 %v1204
        %v1206 = vlaneseq
        %v1207 = vshrl.u32 %v1206, 7
        %v1208 = vsub.s32 %v1205, %v1207
        %v1209 = vrot.slane %v1187, %v1208
        %v1211 = vunpack.c.l.s4 1966171168
        %v1212 = vunpack.c.0.s8 %v1211
        %v1213 = vlaneseq
        %v1214 = vshrl.u32 %v1213, 7
        %v1215 = vsub.s32 %v1212, %v1214
        %v1216 = vrot.slane %v1188, %v1215
        %v1217 = vcombine.low %v1195, %v1202
        %v1218 = vcombine.low %v1209, %v1216
        %v1220 = vunpack.c.l.s4 1966171168
        %v1221 = vunpack.c.0.s8 %v1220
        %v1222 = vlaneseq
        %v1223 = vshrl.u32 %v1222, 7
        %v1224 = vsub.s32 %v1221, %v1223
        %v1225 = vrot.slane %v1217, %v1224
        %v1227 = vunpack.c.l.s4 1966171168
        %v1228 = vunpack.c.0.s8 %v1227
        %v1229 = vlaneseq
        %v1230 = vshrl.u32 %v1229, 7
        %v1231 = vsub.s32 %v1228, %v1230
        %v1232 = vrot.slane %v1218, %v1231
        %v1233 = vcombine.low %v1225, %v1232
        %v1235 = vmax.f32 %v1120, %v1233
        %1236 = vst [vmem:[%s402] sm:$0xff] %v1235
        // Predicated region
        $region77: #{_lambda_.2} parent=47 // pred_check
          %p1237 = pneg %p405
        $region78: #{_lambda_.2} parent=47 // pred_check_branch
          %1239 = sbr.rel (%p1237) target = $region80
        $region79: #{_lambda_.2} parent=47 // pred_region
          %v1240 = vld [vmem:[%s402] sm:$0xff]
          %v1241 = vld [vmem:[#allocation10] sm:$0xff]
          %v1242 = vadd.f32 %v1240, %v1241
          %v1243 = vmax.f32 %v1242, 0.0
          %1244 = vst [vmem:[%s402] sm:$0xff] %v1243
        $region80: #{_lambda_.2} parent=47 // pred_fallthru
          _
        %s1245 = sadd.s32 %s27, %s28
        %p1246 = scmp.lt.s32.totalorder %s1245, 1
        %s1247 = scalar_select %p1246, %s1245, 1
        %s1248 = smul.addr %s1247, 8
        %s1249 = scalar_lea.vmem %s7, %s1248
        // Predicated region
        $region81: #{_lambda_.2} parent=47 // pred_check
          %p1250 = pneg %p217
        $region82: #{_lambda_.2} parent=47 // pred_check_branch
          %1252 = sbr.rel (%p1250) target = $region84
        $region83: #{_lambda_.2} parent=47 // pred_region
          %s1253 = sadd.s32 %s27, %s28
        $region84: #{_lambda_.2} parent=47 // pred_fallthru
          _
      $region48: #{_lambda_.2} parent=5 // pred_fallthru
        _
      %p1254 = scmp.le.s32.totalorder 2, %s17
      // Predicated region
      $region85: #{_lambda_.2} parent=5 // pred_check
        %p1255 = pneg %p1254
      $region86: #{_lambda_.2} parent=5 // pred_check_branch
        %1257 = sbr.rel (%p1255) target = $region88
      $region87: #{_lambda_.2} parent=5 // pred_region
        %s1258 = ssub.s32 %s17, 2
        // Predicated region
        $region89: #{_lambda_.2} parent=87 // pred_check
          %p1259 = pneg %p223
        $region90: #{_lambda_.2} parent=87 // pred_check_branch
          %1261 = sbr.rel (%p1259) target = $region92
        $region91: #{_lambda_.2} parent=87 // pred_region
          %s1262 = sadd.s32 %s30, %s31
          %p1263 = scmp.lt.s32.totalorder %s1262, 1
          %s1264 = scalar_select %p1263, %s1262, 1
          %s1265 = smul.addr %s1264, 8
          %s1266 = scalar_lea.vmem %s7, %s1265
        $region92: #{_lambda_.2} parent=87 // pred_fallthru
          _
      $region88: #{_lambda_.2} parent=5 // pred_fallthru
        _
    $region6: #{_lambda_.2} parent=1 // loop_footer
      %s21 = sadd.s32 1, %s17
    $region7: #{_lambda_.2} parent=1 // loop_footer_branch
      %16 = sbr.rel target = $region3
    $region8: #{_lambda_.2} parent=1 // loop_exit
      _
    %1267 = vsyncpa [#allocation3], 1
    %s1268 = scalar_lea.sflag [#allocation3], 1
    %1269 = vsyncpa %s1268, 1
    %1270 = vsyncpa [#allocation5], 1
    %1271 = vsyncpa [#allocation8], 1
    %1272 = vsyncpa [#allocation11], 1

// kernel: _lambda_.3
$region0: #{_lambda_.3}
  #allocation0 [shape = 'u32[]', space=smem, size = 0x4, offset = 0x4, fixed_abs, tag = 'smem constant byte address 0x4 - core index']
  #allocation1 [shape = 'u32[144,128]{1,0:T(1,128)}', space=vmem, size = 0x12000, scoped, tag = 'internal scratch']
  %s0 = inlined_call_operand.vmem [shape: bf16[2,16,4], index: 0, kind: input, shape index: {}]
  %s1 = inlined_call_operand.vmem [shape: bf16[2,4,64], index: 1, kind: input, shape index: {}]
  %s2 = inlined_call_operand.vmem [shape: f32[1,64], index: 2, kind: input, shape index: {}]
  %s3 = inlined_call_operand.vmem [shape: bf16[64,128], index: 3, kind: input, shape index: {}]
  %s4 = inlined_call_operand.vmem [shape: f32[1,128], index: 4, kind: input, shape index: {}]
  %s5 = inlined_call_operand.vmem [shape: bf16[128,1024], index: 5, kind: input, shape index: {}]
  %s6 = inlined_call_operand.vmem [shape: f32[1,1024], index: 6, kind: input, shape index: {}]
  %s7 = inlined_call_operand.vmem [shape: f32[2,1,1024], index: 7, kind: output, shape index: {}]
  %s8 = sld [smem:[#allocation0]]
  $region69: #{_lambda_.3} parent=0
    _
  %s10 = ssub.s32 1, %s8
  %s11 = scalar_select 0, %s10, %s8
  loop: start=0, step=1, limit=4
  $region2: #{_lambda_.3} parent=0 // loop_pre_header
    _
  $region3: #{_lambda_.3} parent=0 // loop_header
    %s13 = sphi 0, %s17
    %p14 = scmp.ge.s32.totalorder %s13, 4
    %s20 = sphi 0, %s39
    %s21 = sphi 0, %s35
    %s22 = sphi 0, %s31
    %s23 = sphi 0, %s20
    %s24 = sphi 0, %s21
    %s25 = sphi 0, %s22
    %s26 = sphi 0, %s23
    %s27 = sphi 0, %s24
    %s28 = sphi 0, %s25
    %s46 = sphi 0, %s48
    %s49 = sphi 0, %s46
    %s50 = sphi 0, %s49
    %s66 = sphi 0, %s50
    %s72 = sphi 0, %s74
    %s75 = sphi 0, %s72
    %s76 = sphi 0, %s75
    %s92 = sphi 0, %s76
    %s96 = sphi 0, %s96
    %s98 = sphi 0, %s96
    %s99 = sphi 0, %s98
    %s113 = sphi 0, %s99
    %s117 = sphi 0, %s117
    %s119 = sphi 0, %s117
    %s120 = sphi 0, %s119
    %s134 = sphi 0, %s120
    %s138 = sphi 0, %s138
    %s140 = sphi 0, %s138
    %s141 = sphi 0, %s140
    %s155 = sphi 0, %s141
    %s159 = sphi 0, %s159
    %s161 = sphi 0, %s159
    %s162 = sphi 0, %s161
    %s176 = sphi 0, %s162
    %s180 = sphi 0, %s180
    %s182 = sphi 0, %s180
    %s183 = sphi 0, %s182
    %s197 = sphi 0, %s183
    %s205 = sphi 0, %s207
    %s208 = sphi 0, %s205
    %s209 = sphi 0, %s208
    %s225 = sphi 0, %s209
  $region4: #{_lambda_.3} parent=0 // loop_header_branch
    %16 = sbr.rel (%p14) target = $region8
  $region5: #{_lambda_.3} parent=0 // loop_body
    %s18 = ssub.s32 %s13, 1
    %s19 = ssub.s32 %s13, 2
    %s29 = sadd.s32 1, %s22
    %p30 = scmp.ge.s32.totalorder %s29, 1
    %s31 = scalar_select %p30, 0, %s29
    %s32 = sadd.s32 1, %s21
    %s33 = scalar_select %p30, %s32, %s21
    %p34 = scmp.ge.s32.totalorder %s33, 1
    %s35 = scalar_select %p34, 0, %s33
    %s36 = sadd.s32 1, %s20
    %s37 = scalar_select %p34, %s36, %s20
    %p38 = scmp.ge.s32.totalorder %s37, 2
    %s39 = scalar_select %p38, 0, %s37
    %s40 = sadd.s32 %s21, %s22
    %s41 = sadd.s32 %s35, %s31
    %s42 = ssub.s32 %s20, %s39
    %s43 = ssub.s32 %s40, %s41
    %s44 = sor.u32 %s42, %s43
    %p45 = scmp.eq.s32.totalorder %s44, 0
    %s47 = sadd.s32 %s46, 1
    %s48 = scalar_select %p45, %s46, %s47
    %p51 = pneg %p45
    %p52 = scmp.eq.s32.totalorder %s13, 1
    %p53 = por %p51, %p52
    %p54 = scmp.ne.s32.totalorder %s46, %s49
    %p55 = scmp.eq.s32.totalorder %s13, 0
    %p56 = por %p54, %p55
    %p57 = scmp.ne.s32.totalorder %s46, %s49
    %p58 = scmp.eq.s32.totalorder %s18, 1
    %p59 = por %p57, %p58
    %p60 = scmp.ne.s32.totalorder %s49, %s50
    %p61 = scmp.eq.s32.totalorder %s18, 0
    %p62 = por %p60, %p61
    %p63 = scmp.ne.s32.totalorder %s49, %s50
    %p64 = scmp.eq.s32.totalorder %s19, 1
    %p65 = por %p63, %p64
    %p67 = scmp.ne.s32.totalorder %s50, %s66
    %p68 = scmp.eq.s32.totalorder %s19, 0
    %p69 = por %p67, %p68
    %s70 = ssub.s32 %s20, %s39
    %p71 = scmp.eq.s32.totalorder %s70, 0
    %s73 = sadd.s32 %s72, 1
    %s74 = scalar_select %p71, %s72, %s73
    %p77 = pneg %p71
    %p78 = scmp.eq.s32.totalorder %s13, 1
    %p79 = por %p77, %p78
    %p80 = scmp.ne.s32.totalorder %s72, %s75
    %p81 = scmp.eq.s32.totalorder %s13, 0
    %p82 = por %p80, %p81
    %p83 = scmp.ne.s32.totalorder %s72, %s75
    %p84 = scmp.eq.s32.totalorder %s18, 1
    %p85 = por %p83, %p84
    %p86 = scmp.ne.s32.totalorder %s75, %s76
    %p87 = scmp.eq.s32.totalorder %s18, 0
    %p88 = por %p86, %p87
    %p89 = scmp.ne.s32.totalorder %s75, %s76
    %p90 = scmp.eq.s32.totalorder %s19, 1
    %p91 = por %p89, %p90
    %p93 = scmp.ne.s32.totalorder %s76, %s92
    %p94 = scmp.eq.s32.totalorder %s19, 0
    %p95 = por %p93, %p94
    %s97 = sadd.s32 %s96, 1
    %p100 = scmp.eq.s32.totalorder %s13, 1
    %p101 = scmp.ne.s32.totalorder %s96, %s98
    %p102 = scmp.eq.s32.totalorder %s13, 0
    %p103 = por %p101, %p102
    %p104 = scmp.ne.s32.totalorder %s96, %s98
    %p105 = scmp.eq.s32.totalorder %s18, 1
    %p106 = por %p104, %p105
    %p107 = scmp.ne.s32.totalorder %s98, %s99
    %p108 = scmp.eq.s32.totalorder %s18, 0
    %p109 = por %p107, %p108
    %p110 = scmp.ne.s32.totalorder %s98, %s99
    %p111 = scmp.eq.s32.totalorder %s19, 1
    %p112 = por %p110, %p111
    %p114 = scmp.ne.s32.totalorder %s99, %s113
    %p115 = scmp.eq.s32.totalorder %s19, 0
    %p116 = por %p114, %p115
    %s118 = sadd.s32 %s117, 1
    %p121 = scmp.eq.s32.totalorder %s13, 1
    %p122 = scmp.ne.s32.totalorder %s117, %s119
    %p123 = scmp.eq.s32.totalorder %s13, 0
    %p124 = por %p122, %p123
    %p125 = scmp.ne.s32.totalorder %s117, %s119
    %p126 = scmp.eq.s32.totalorder %s18, 1
    %p127 = por %p125, %p126
    %p128 = scmp.ne.s32.totalorder %s119, %s120
    %p129 = scmp.eq.s32.totalorder %s18, 0
    %p130 = por %p128, %p129
    %p131 = scmp.ne.s32.totalorder %s119, %s120
    %p132 = scmp.eq.s32.totalorder %s19, 1
    %p133 = por %p131, %p132
    %p135 = scmp.ne.s32.totalorder %s120, %s134
    %p136 = scmp.eq.s32.totalorder %s19, 0
    %p137 = por %p135, %p136
    %s139 = sadd.s32 %s138, 1
    %p142 = scmp.eq.s32.totalorder %s13, 1
    %p143 = scmp.ne.s32.totalorder %s138, %s140
    %p144 = scmp.eq.s32.totalorder %s13, 0
    %p145 = por %p143, %p144
    %p146 = scmp.ne.s32.totalorder %s138, %s140
    %p147 = scmp.eq.s32.totalorder %s18, 1
    %p148 = por %p146, %p147
    %p149 = scmp.ne.s32.totalorder %s140, %s141
    %p150 = scmp.eq.s32.totalorder %s18, 0
    %p151 = por %p149, %p150
    %p152 = scmp.ne.s32.totalorder %s140, %s141
    %p153 = scmp.eq.s32.totalorder %s19, 1
    %p154 = por %p152, %p153
    %p156 = scmp.ne.s32.totalorder %s141, %s155
    %p157 = scmp.eq.s32.totalorder %s19, 0
    %p158 = por %p156, %p157
    %s160 = sadd.s32 %s159, 1
    %p163 = scmp.eq.s32.totalorder %s13, 1
    %p164 = scmp.ne.s32.totalorder %s159, %s161
    %p165 = scmp.eq.s32.totalorder %s13, 0
    %p166 = por %p164, %p165
    %p167 = scmp.ne.s32.totalorder %s159, %s161
    %p168 = scmp.eq.s32.totalorder %s18, 1
    %p169 = por %p167, %p168
    %p170 = scmp.ne.s32.totalorder %s161, %s162
    %p171 = scmp.eq.s32.totalorder %s18, 0
    %p172 = por %p170, %p171
    %p173 = scmp.ne.s32.totalorder %s161, %s162
    %p174 = scmp.eq.s32.totalorder %s19, 1
    %p175 = por %p173, %p174
    %p177 = scmp.ne.s32.totalorder %s162, %s176
    %p178 = scmp.eq.s32.totalorder %s19, 0
    %p179 = por %p177, %p178
    %s181 = sadd.s32 %s180, 1
    %p184 = scmp.eq.s32.totalorder %s13, 1
    %p185 = scmp.ne.s32.totalorder %s180, %s182
    %p186 = scmp.eq.s32.totalorder %s13, 0
    %p187 = por %p185, %p186
    %p188 = scmp.ne.s32.totalorder %s180, %s182
    %p189 = scmp.eq.s32.totalorder %s18, 1
    %p190 = por %p188, %p189
    %p191 = scmp.ne.s32.totalorder %s182, %s183
    %p192 = scmp.eq.s32.totalorder %s18, 0
    %p193 = por %p191, %p192
    %p194 = scmp.ne.s32.totalorder %s182, %s183
    %p195 = scmp.eq.s32.totalorder %s19, 1
    %p196 = por %p194, %p195
    %p198 = scmp.ne.s32.totalorder %s183, %s197
    %p199 = scmp.eq.s32.totalorder %s19, 0
    %p200 = por %p198, %p199
    %s201 = sadd.s32 %s20, %s21
    %s202 = sadd.s32 %s39, %s35
    %s203 = ssub.s32 %s201, %s202
    %p204 = scmp.eq.s32.totalorder %s203, 0
    %s206 = sadd.s32 %s205, 1
    %s207 = scalar_select %p204, %s205, %s206
    %p210 = pneg %p204
    %p211 = scmp.eq.s32.totalorder %s13, 1
    %p212 = por %p210, %p211
    %p213 = scmp.ne.s32.totalorder %s205, %s208
    %p214 = scmp.eq.s32.totalorder %s13, 0
    %p215 = por %p213, %p214
    %p216 = scmp.ne.s32.totalorder %s205, %s208
    %p217 = scmp.eq.s32.totalorder %s18, 1
    %p218 = por %p216, %p217
    %p219 = scmp.ne.s32.totalorder %s208, %s209
    %p220 = scmp.eq.s32.totalorder %s18, 0
    %p221 = por %p219, %p220
    %p222 = scmp.ne.s32.totalorder %s208, %s209
    %p223 = scmp.eq.s32.totalorder %s19, 1
    %p224 = por %p222, %p223
    %p226 = scmp.ne.s32.totalorder %s209, %s225
    %p227 = scmp.eq.s32.totalorder %s19, 0
    %p228 = por %p226, %p227
    %p229 = scmp.le.s32.totalorder 1, %s13
    %p230 = scmp.lt.s32.totalorder %s13, 3
    %p231 = pnand %p229, %p230
    %p232 = pneg %p231
    // Predicated region
    $region9: #{_lambda_.3} parent=5 // pred_check
      _
    $region10: #{_lambda_.3} parent=5 // pred_check_branch
      %234 = sbr.rel (%p231) target = $region12
    $region11: #{_lambda_.3} parent=5 // pred_region
      %s235 = ssub.s32 %s13, 1
      // Predicated region
      $region13: #{_lambda_.3} parent=11 // pred_check
        %p236 = pneg %p109
      $region14: #{_lambda_.3} parent=11 // pred_check_branch
        %238 = sbr.rel (%p236) target = $region16
      $region15: #{_lambda_.3} parent=11 // pred_region
        _
      $region16: #{_lambda_.3} parent=11 // pred_fallthru
        _
      // Predicated region
      $region17: #{_lambda_.3} parent=11 // pred_check
        %p239 = pneg %p130
      $region18: #{_lambda_.3} parent=11 // pred_check_branch
        %241 = sbr.rel (%p239) target = $region20
      $region19: #{_lambda_.3} parent=11 // pred_region
        _
      $region20: #{_lambda_.3} parent=11 // pred_fallthru
        _
      // Predicated region
      $region21: #{_lambda_.3} parent=11 // pred_check
        %p242 = pneg %p151
      $region22: #{_lambda_.3} parent=11 // pred_check_branch
        %244 = sbr.rel (%p242) target = $region24
      $region23: #{_lambda_.3} parent=11 // pred_region
        _
      $region24: #{_lambda_.3} parent=11 // pred_fallthru
        _
      // Predicated region
      $region25: #{_lambda_.3} parent=11 // pred_check
        %p245 = pneg %p172
      $region26: #{_lambda_.3} parent=11 // pred_check_branch
        %247 = sbr.rel (%p245) target = $region28
      $region27: #{_lambda_.3} parent=11 // pred_region
        _
      $region28: #{_lambda_.3} parent=11 // pred_fallthru
        _
      // Predicated region
      $region29: #{_lambda_.3} parent=11 // pred_check
        %p248 = pneg %p193
      $region30: #{_lambda_.3} parent=11 // pred_check_branch
        %250 = sbr.rel (%p248) target = $region32
      $region31: #{_lambda_.3} parent=11 // pred_region
        _
      $region32: #{_lambda_.3} parent=11 // pred_fallthru
        _
    $region12: #{_lambda_.3} parent=5 // pred_fallthru
      _
    %p251 = scmp.lt.s32.totalorder %s13, 2
    // Predicated region
    $region33: #{_lambda_.3} parent=5 // pred_check
      %p252 = pneg %p251
    $region34: #{_lambda_.3} parent=5 // pred_check_branch
      %254 = sbr.rel (%p252) target = $region36
    $region35: #{_lambda_.3} parent=5 // pred_region
      // Predicated region
      $region37: #{_lambda_.3} parent=35 // pred_check
        %p255 = pneg %p56
      $region38: #{_lambda_.3} parent=35 // pred_check_branch
        %257 = sbr.rel (%p255) target = $region40
      $region39: #{_lambda_.3} parent=35 // pred_region
        %s258 = sadd.s32 %s21, %s22
        %s259 = smul.u32 2, %s258
        %p260 = scmp.lt.s32.totalorder %s20, 1
        %s261 = scalar_select %p260, %s20, 1
        %p262 = scmp.lt.s32.totalorder %s259, 1
        %s263 = scalar_select %p262, %s259, 1
        %s264 = smul.addr %s261, 2
        %s265 = sadd.s32 %s263, %s264
        %s266 = smul.addr %s265, 4
        %s267 = scalar_lea.vmem %s0, %s266
        %s268 = sadd.s32 %s21, %s22
        %s269 = smul.u32 2, %s268
      $region40: #{_lambda_.3} parent=35 // pred_fallthru
        _
      // Predicated region
      $region41: #{_lambda_.3} parent=35 // pred_check
        %p270 = pneg %p82
      $region42: #{_lambda_.3} parent=35 // pred_check_branch
        %272 = sbr.rel (%p270) target = $region44
      $region43: #{_lambda_.3} parent=35 // pred_region
        %p273 = scmp.lt.s32.totalorder %s20, 1
        %s274 = scalar_select %p273, %s20, 1
        %s275 = smul.addr %s274, 2
        %s276 = scalar_lea.vmem %s1, %s275
      $region44: #{_lambda_.3} parent=35 // pred_fallthru
        _
    $region36: #{_lambda_.3} parent=5 // pred_fallthru
      _
    %p277 = scmp.le.s32.totalorder 1, %s13
    %p278 = scmp.lt.s32.totalorder %s13, 3
    %p279 = pnand %p277, %p278
    %p280 = pneg %p279
    // Predicated region
    $region45: #{_lambda_.3} parent=5 // pred_check
      _
    $region46: #{_lambda_.3} parent=5 // pred_check_branch
      %282 = sbr.rel (%p279) target = $region48
    $region47: #{_lambda_.3} parent=5 // pred_region
      %s283 = ssub.s32 %s13, 1
      %s284 = sadd.s32 %s24, %s25
      %s285 = smul.u32 2, %s284
      %p286 = scmp.lt.s32.totalorder %s23, 1
      %s287 = scalar_select %p286, %s23, 1
      %p288 = scmp.lt.s32.totalorder %s285, 1
      %s289 = scalar_select %p288, %s285, 1
      %s290 = smul.addr %s287, 2
      %s291 = sadd.s32 %s289, %s290
      %s292 = smul.addr %s291, 4
      %s293 = scalar_lea.vmem %s0, %s292
      %p294 = pneg %p62
      %p295 = pneg %p59
      %p296 = scmp.lt.s32.totalorder %s23, 1
      %s297 = scalar_select %p296, %s23, 1
      %s298 = smul.addr %s297, 2
      %s299 = scalar_lea.vmem %s1, %s298
      %p300 = pneg %p88
      %p301 = pneg %p85
      %p302 = pneg %p109
      %p303 = pneg %p106
      %p304 = pneg %p130
      %p305 = pneg %p127
      %p306 = pneg %p151
      %p307 = pneg %p148
      %p308 = pneg %p172
      %p309 = pneg %p169
      %p310 = pneg %p193
      %p311 = pneg %p190
      %p312 = pneg %p221
      %p313 = pneg %p218
      %s314 = sadd.s32 %s23, %s24
      %p315 = scmp.lt.s32.totalorder %s314, 1
      %s316 = scalar_select %p315, %s314, 1
      %s317 = smul.addr %s316, 8
      %s318 = scalar_lea.vmem %s7, %s317
      %s319 = sadd.s32 %s24, %s25
      %s320 = smul.u32 2, %s319
      %p321 = scmp.lt.s32.totalorder %s23, 1
      %s322 = scalar_select %p321, %s23, 1
      %p323 = scmp.lt.s32.totalorder %s320, 1
      %s324 = scalar_select %p323, %s320, 1
      %s325 = smul.addr %s322, 2
      %s326 = sadd.s32 %s324, %s325
      %s327 = smul.addr %s326, 4
      %s328 = scalar_lea.vmem %s0, %s327
      %s329 = sadd.s32 %s24, %s25
      %s330 = smul.u32 2, %s329
      %p331 = scmp.lt.s32.totalorder %s23, 1
      %s332 = scalar_select %p331, %s23, 1
      %s333 = smul.addr %s332, 2
      %s334 = scalar_lea.vmem %s1, %s333
      %s335 = sadd.s32 %s23, %s24
      %p336 = scmp.lt.s32.totalorder %s335, 1
      %s337 = scalar_select %p336, %s335, 1
      %s338 = smul.addr %s337, 8
      %s339 = scalar_lea.vmem %s7, %s338
      %s340 = sadd.s32 %s23, %s24
      %p342 = scmp.eq.s32.totalorder %s25, 0
      // Predicated region
      $region49: #{_lambda_.3} parent=47 // pred_check
        %p343 = pneg %p342
      $region50: #{_lambda_.3} parent=47 // pred_check_branch
        %345 = sbr.rel (%p343) target = $region52
      $region51: #{_lambda_.3} parent=47 // pred_region
        %346 = vst [vmem:[%s339] sm:$0xff] -inf
      $region52: #{_lambda_.3} parent=47 // pred_fallthru
        _
      %v347 = vld [vmem:[%s328] sm:$0xf]
      %v348 = vld [vmem:[%s328 + $0x4] sm:$0xf]
      %v349 = vld [vmem:[%s334] sm:$0x3]
      %v350 = vld [vmem:[%s2] sm:$0x1]
      %v352 = vlaneseq
      %v353 = vshrl.u32 %v352, 7
      %v354 = vsub.s32 0, %v353
      %v355 = vrot.slane %v350, %v354
      %v359 = vunpack.c.l.b16 %v347
      %v360 = vunpack.c.l.b16 %v348
      %v361 = vpack.c.b16 %v360, %v359
      %vm362 = vcmask 31744
      %v364 = vsel %vm362, %v361, 0
      %vm366 = vcmask 1041408
      %v368 = vsel %vm366, %v349, 0
      %370 = vmatprep.subr.bf16.mxu0 0
      %371 = vmatpush1.bf16.msra.mxu0 0
      %372 = vmatprep.subr.bf16.mxu0 0
      %373 = vmatpush1.bf16.msra.mxu0 0
      %374 = vmatprep.subr.bf16.mxu0 0
      %375 = vmatpush1.bf16.msra.mxu0 0
      %376 = vmatprep.subr.bf16.mxu0 0
      %377 = vmatpush1.bf16.msra.mxu0 0
      %378 = vmatprep.subr.bf16.mxu0 0
      %379 = vmatpush1.bf16.msra.mxu0 0
      %380 = vmatprep.subr.bf16.mxu0 0
      %381 = vmatpush1.bf16.msra.mxu0 0
      %382 = vmatprep.subr.bf16.mxu0 0
      %383 = vmatpush1.bf16.msra.mxu0 0
      %384 = vmatprep.subr.bf16.mxu0 0
      %385 = vmatpush1.bf16.msra.mxu0 %v368
      %386 = vmatprep.subr.bf16.mxu0 0
      %387 = vmatpush2.bf16.msra.mxu0 0
      %388 = vmatprep.subr.bf16.mxu0 0
      %389 = vmatpush2.bf16.msra.mxu0 0
      %390 = vmatprep.subr.bf16.mxu0 0
      %391 = vmatpush2.bf16.msra.mxu0 0
      %392 = vmatprep.subr.bf16.mxu0 0
      %393 = vmatpush2.bf16.msra.mxu0 0
      %394 = vmatprep.subr.bf16.mxu0 0
      %395 = vmatpush2.bf16.msra.mxu0 0
      %396 = vmatprep.subr.bf16.mxu0 0
      %397 = vmatpush2.bf16.msra.mxu0 0
      %398 = vmatprep.subr.bf16.mxu0 0
      %399 = vmatpush2.bf16.msra.mxu0 0
      %400 = vmatprep.subr.bf16.mxu0 0
      %401 = vmatpush2.bf16.msra.mxu0 0
      %402 = vmatprep.mubr.bf16.mxu0 0
      %403 = vmatmul.mubr.bf16.gmra.mxu0 %v364
      %v404 = vpop.f32.mrf.mxu0
      %v405 = vadd.f32 %v355, %v404
      %v406 = vpop.f32.mrf.mxu0
      %v407 = vpop.f32.mrf.mxu0
      %v408 = vadd.f32 %v355, %v407
      %v409 = vpop.f32.mrf.mxu0
      %410 = vdwg.mxu0
      %v411 = vmax.f32 %v405, 0.0
      %v412 = vmax.f32 %v408, 0.0
      %v413 = vpack.c.bf16 %v412, %v411
      %v414 = vld [vmem:[%s3] sm:$0xf]
      %v415 = vld [vmem:[%s3 + $0x4] sm:$0xf]
      %v416 = vld [vmem:[%s3 + $0x8] sm:$0xf]
      %v417 = vld [vmem:[%s3 + $0xc] sm:$0xf]
      %v418 = vld [vmem:[%s3 + $0x10] sm:$0xf]
      %v419 = vld [vmem:[%s3 + $0x14] sm:$0xf]
      %v420 = vld [vmem:[%s3 + $0x18] sm:$0xf]
      %v421 = vld [vmem:[%s3 + $0x1c] sm:$0xf]
      %v422 = vld [vmem:[%s4] sm:$0x1]
      %v424 = vlaneseq
      %v425 = vshrl.u32 %v424, 7
      %v426 = vsub.s32 0, %v425
      %v427 = vrot.slane %v422, %v426
      %v437 = vunpack.c.l.b16 %v414
      %v438 = vunpack.c.l.b16 %v415
      %v439 = vunpack.c.l.b16 %v416
      %v440 = vunpack.c.l.b16 %v417
      %v441 = vunpack.c.l.b16 %v418
      %v442 = vunpack.c.l.b16 %v419
      %v443 = vunpack.c.l.b16 %v420
      %v444 = vunpack.c.l.b16 %v421
      %v445 = vpack.c.b16 %v438, %v437
      %v446 = vpack.c.b16 %v440, %v439
      %v447 = vpack.c.b16 %v442, %v441
      %v448 = vpack.c.b16 %v444, %v443
      %vm453 = vcmask 523264
      %v455 = vsel %vm453, %v413, 0
      %457 = vmatprep.subr.bf16.mxu0 0
      %458 = vmatpush1.bf16.msra.mxu0 0
      %459 = vmatprep.subr.bf16.mxu0 0
      %460 = vmatpush1.bf16.msra.mxu0 0
      %461 = vmatprep.subr.bf16.mxu0 0
      %462 = vmatpush1.bf16.msra.mxu0 0
      %463 = vmatprep.subr.bf16.mxu0 0
      %464 = vmatpush1.bf16.msra.mxu0 0
      %465 = vmatprep.subr.bf16.mxu0 0
      %466 = vmatpush1.bf16.msra.mxu0 %v448
      %467 = vmatprep.subr.bf16.mxu0 0
      %468 = vmatpush1.bf16.msra.mxu0 %v447
      %469 = vmatprep.subr.bf16.mxu0 0
      %470 = vmatpush1.bf16.msra.mxu0 %v446
      %471 = vmatprep.subr.bf16.mxu0 0
      %472 = vmatpush1.bf16.msra.mxu0 %v445
      %473 = vmatprep.subr.bf16.mxu0 0
      %474 = vmatpush2.bf16.msra.mxu0 0
      %475 = vmatprep.subr.bf16.mxu0 0
      %476 = vmatpush2.bf16.msra.mxu0 0
      %477 = vmatprep.subr.bf16.mxu0 0
      %478 = vmatpush2.bf16.msra.mxu0 0
      %479 = vmatprep.subr.bf16.mxu0 0
      %480 = vmatpush2.bf16.msra.mxu0 0
      %481 = vmatprep.subr.bf16.mxu0 0
      %482 = vmatpush2.bf16.msra.mxu0 0
      %483 = vmatprep.subr.bf16.mxu0 0
      %484 = vmatpush2.bf16.msra.mxu0 0
      %485 = vmatprep.subr.bf16.mxu0 0
      %486 = vmatpush2.bf16.msra.mxu0 0
      %487 = vmatprep.subr.bf16.mxu0 0
      %488 = vmatpush2.bf16.msra.mxu0 0
      %489 = vmatprep.mubr.bf16.mxu0 0
      %490 = vmatmul.mubr.bf16.gmra.mxu0 %v455
      %v491 = vpop.f32.mrf.mxu0
      %v492 = vadd.f32 %v427, %v491
      %v493 = vpop.f32.mrf.mxu0
      %v494 = vpop.f32.mrf.mxu0
      %v495 = vadd.f32 %v427, %v494
      %v496 = vpop.f32.mrf.mxu0
      %497 = vdwg.mxu0
      %v498 = vmax.f32 %v492, 0.0
      %v499 = vmax.f32 %v495, 0.0
      %v500 = vpack.c.bf16 %v499, %v498
      %v501 = vld [vmem:[%s5] sm:$0xff]
      %v502 = vld [vmem:[%s5 + $0x8] sm:$0xff]
      %v503 = vld [vmem:[%s5 + $0x10] sm:$0xff]
      %v504 = vld [vmem:[%s5 + $0x18] sm:$0xff]
      %v505 = vld [vmem:[%s5 + $0x20] sm:$0xff]
      %v506 = vld [vmem:[%s5 + $0x28] sm:$0xff]
      %v507 = vld [vmem:[%s5 + $0x30] sm:$0xff]
      %v508 = vld [vmem:[%s5 + $0x38] sm:$0xff]
      %v509 = vld [vmem:[%s5 + $0x40] sm:$0xff]
      %v510 = vld [vmem:[%s5 + $0x48] sm:$0xff]
      %v511 = vld [vmem:[%s5 + $0x50] sm:$0xff]
      %v512 = vld [vmem:[%s5 + $0x58] sm:$0xff]
      %v513 = vld [vmem:[%s5 + $0x60] sm:$0xff]
      %v514 = vld [vmem:[%s5 + $0x68] sm:$0xff]
      %v515 = vld [vmem:[%s5 + $0x70] sm:$0xff]
      %v516 = vld [vmem:[%s5 + $0x78] sm:$0xff]
      %v517 = vld [vmem:[%s5 + $0x80] sm:$0xff]
      %v518 = vld [vmem:[%s5 + $0x88] sm:$0xff]
      %v519 = vld [vmem:[%s5 + $0x90] sm:$0xff]
      %v520 = vld [vmem:[%s5 + $0x98] sm:$0xff]
      %v521 = vld [vmem:[%s5 + $0xa0] sm:$0xff]
      %v522 = vld [vmem:[%s5 + $0xa8] sm:$0xff]
      %v523 = vld [vmem:[%s5 + $0xb0] sm:$0xff]
      %v524 = vld [vmem:[%s5 + $0xb8] sm:$0xff]
      %v525 = vld [vmem:[%s5 + $0xc0] sm:$0xff]
      %v526 = vld [vmem:[%s5 + $0xc8] sm:$0xff]
      %v527 = vld [vmem:[%s5 + $0xd0] sm:$0xff]
      %v528 = vld [vmem:[%s5 + $0xd8] sm:$0xff]
      %v529 = vld [vmem:[%s5 + $0xe0] sm:$0xff]
      %v530 = vld [vmem:[%s5 + $0xe8] sm:$0xff]
      %v531 = vld [vmem:[%s5 + $0xf0] sm:$0xff]
      %v532 = vld [vmem:[%s5 + $0xf8] sm:$0xff]
      %v533 = vld [vmem:[%s5 + $0x100] sm:$0xff]
      %v534 = vld [vmem:[%s5 + $0x108] sm:$0xff]
      %v535 = vld [vmem:[%s5 + $0x110] sm:$0xff]
      %v536 = vld [vmem:[%s5 + $0x118] sm:$0xff]
      %v537 = vld [vmem:[%s5 + $0x120] sm:$0xff]
      %v538 = vld [vmem:[%s5 + $0x128] sm:$0xff]
      %v539 = vld [vmem:[%s5 + $0x130] sm:$0xff]
      %v540 = vld [vmem:[%s5 + $0x138] sm:$0xff]
      %v541 = vld [vmem:[%s5 + $0x140] sm:$0xff]
      %v542 = vld [vmem:[%s5 + $0x148] sm:$0xff]
      %v543 = vld [vmem:[%s5 + $0x150] sm:$0xff]
      %v544 = vld [vmem:[%s5 + $0x158] sm:$0xff]
      %v545 = vld [vmem:[%s5 + $0x160] sm:$0xff]
      %v546 = vld [vmem:[%s5 + $0x168] sm:$0xff]
      %v547 = vld [vmem:[%s5 + $0x170] sm:$0xff]
      %v548 = vld [vmem:[%s5 + $0x178] sm:$0xff]
      %v549 = vld [vmem:[%s5 + $0x180] sm:$0xff]
      %v550 = vld [vmem:[%s5 + $0x188] sm:$0xff]
      %v551 = vld [vmem:[%s5 + $0x190] sm:$0xff]
      %v552 = vld [vmem:[%s5 + $0x198] sm:$0xff]
      %v553 = vld [vmem:[%s5 + $0x1a0] sm:$0xff]
      %v554 = vld [vmem:[%s5 + $0x1a8] sm:$0xff]
      %v555 = vld [vmem:[%s5 + $0x1b0] sm:$0xff]
      %v556 = vld [vmem:[%s5 + $0x1b8] sm:$0xff]
      %v557 = vld [vmem:[%s5 + $0x1c0] sm:$0xff]
      %v558 = vld [vmem:[%s5 + $0x1c8] sm:$0xff]
      %v559 = vld [vmem:[%s5 + $0x1d0] sm:$0xff]
      %v560 = vld [vmem:[%s5 + $0x1d8] sm:$0xff]
      %v561 = vld [vmem:[%s5 + $0x1e0] sm:$0xff]
      %v562 = vld [vmem:[%s5 + $0x1e8] sm:$0xff]
      %v563 = vld [vmem:[%s5 + $0x1f0] sm:$0xff]
      %v564 = vld [vmem:[%s5 + $0x1f8] sm:$0xff]
      %v629 = vunpack.c.l.b16 %v501
      %v630 = vunpack.c.h.b16 %v501
      %v631 = vunpack.c.l.b16 %v502
      %v632 = vunpack.c.h.b16 %v502
      %v633 = vunpack.c.l.b16 %v503
      %v634 = vunpack.c.h.b16 %v503
      %v635 = vunpack.c.l.b16 %v504
      %v636 = vunpack.c.h.b16 %v504
      %v637 = vunpack.c.l.b16 %v505
      %v638 = vunpack.c.h.b16 %v505
      %v639 = vunpack.c.l.b16 %v506
      %v640 = vunpack.c.h.b16 %v506
      %v641 = vunpack.c.l.b16 %v507
      %v642 = vunpack.c.h.b16 %v507
      %v643 = vunpack.c.l.b16 %v508
      %v644 = vunpack.c.h.b16 %v508
      %v645 = vunpack.c.l.b16 %v509
      %v646 = vunpack.c.h.b16 %v509
      %v647 = vunpack.c.l.b16 %v510
      %v648 = vunpack.c.h.b16 %v510
      %v649 = vunpack.c.l.b16 %v511
      %v650 = vunpack.c.h.b16 %v511
      %v651 = vunpack.c.l.b16 %v512
      %v652 = vunpack.c.h.b16 %v512
      %v653 = vunpack.c.l.b16 %v513
      %v654 = vunpack.c.h.b16 %v513
      %v655 = vunpack.c.l.b16 %v514
      %v656 = vunpack.c.h.b16 %v514
      %v657 = vunpack.c.l.b16 %v515
      %v658 = vunpack.c.h.b16 %v515
      %v659 = vunpack.c.l.b16 %v516
      %v660 = vunpack.c.h.b16 %v516
      %v661 = vunpack.c.l.b16 %v517
      %v662 = vunpack.c.h.b16 %v517
      %v663 = vunpack.c.l.b16 %v518
      %v664 = vunpack.c.h.b16 %v518
      %v665 = vunpack.c.l.b16 %v519
      %v666 = vunpack.c.h.b16 %v519
      %v667 = vunpack.c.l.b16 %v520
      %v668 = vunpack.c.h.b16 %v520
      %v669 = vunpack.c.l.b16 %v521
      %v670 = vunpack.c.h.b16 %v521
      %v671 = vunpack.c.l.b16 %v522
      %v672 = vunpack.c.h.b16 %v522
      %v673 = vunpack.c.l.b16 %v523
      %v674 = vunpack.c.h.b16 %v523
      %v675 = vunpack.c.l.b16 %v524
      %v676 = vunpack.c.h.b16 %v524
      %v677 = vunpack.c.l.b16 %v525
      %v678 = vunpack.c.h.b16 %v525
      %v679 = vunpack.c.l.b16 %v526
      %v680 = vunpack.c.h.b16 %v526
      %v681 = vunpack.c.l.b16 %v527
      %v682 = vunpack.c.h.b16 %v527
      %v683 = vunpack.c.l.b16 %v528
      %v684 = vunpack.c.h.b16 %v528
      %v685 = vunpack.c.l.b16 %v529
      %v686 = vunpack.c.h.b16 %v529
      %v687 = vunpack.c.l.b16 %v530
      %v688 = vunpack.c.h.b16 %v530
      %v689 = vunpack.c.l.b16 %v531
      %v690 = vunpack.c.h.b16 %v531
      %v691 = vunpack.c.l.b16 %v532
      %v692 = vunpack.c.h.b16 %v532
      %v693 = vunpack.c.l.b16 %v533
      %v694 = vunpack.c.h.b16 %v533
      %v695 = vunpack.c.l.b16 %v534
      %v696 = vunpack.c.h.b16 %v534
      %v697 = vunpack.c.l.b16 %v535
      %v698 = vunpack.c.h.b16 %v535
      %v699 = vunpack.c.l.b16 %v536
      %v700 = vunpack.c.h.b16 %v536
      %v701 = vunpack.c.l.b16 %v537
      %v702 = vunpack.c.h.b16 %v537
      %v703 = vunpack.c.l.b16 %v538
      %v704 = vunpack.c.h.b16 %v538
      %v705 = vunpack.c.l.b16 %v539
      %v706 = vunpack.c.h.b16 %v539
      %v707 = vunpack.c.l.b16 %v540
      %v708 = vunpack.c.h.b16 %v540
      %v709 = vunpack.c.l.b16 %v541
      %v710 = vunpack.c.h.b16 %v541
      %v711 = vunpack.c.l.b16 %v542
      %v712 = vunpack.c.h.b16 %v542
      %v713 = vunpack.c.l.b16 %v543
      %v714 = vunpack.c.h.b16 %v543
      %v715 = vunpack.c.l.b16 %v544
      %v716 = vunpack.c.h.b16 %v544
      %v717 = vunpack.c.l.b16 %v545
      %v718 = vunpack.c.h.b16 %v545
      %v719 = vunpack.c.l.b16 %v546
      %v720 = vunpack.c.h.b16 %v546
      %v721 = vunpack.c.l.b16 %v547
      %v722 = vunpack.c.h.b16 %v547
      %v723 = vunpack.c.l.b16 %v548
      %v724 = vunpack.c.h.b16 %v548
      %v725 = vunpack.c.l.b16 %v549
      %v726 = vunpack.c.h.b16 %v549
      %v727 = vunpack.c.l.b16 %v550
      %v728 = vunpack.c.h.b16 %v550
      %v729 = vunpack.c.l.b16 %v551
      %v730 = vunpack.c.h.b16 %v551
      %v731 = vunpack.c.l.b16 %v552
      %v732 = vunpack.c.h.b16 %v552
      %v733 = vunpack.c.l.b16 %v553
      %v734 = vunpack.c.h.b16 %v553
      %v735 = vunpack.c.l.b16 %v554
      %v736 = vunpack.c.h.b16 %v554
      %v737 = vunpack.c.l.b16 %v555
      %v738 = vunpack.c.h.b16 %v555
      %v739 = vunpack.c.l.b16 %v556
      %v740 = vunpack.c.h.b16 %v556
      %v741 = vunpack.c.l.b16 %v557
      %v742 = vunpack.c.h.b16 %v557
      %v743 = vunpack.c.l.b16 %v558
      %v744 = vunpack.c.h.b16 %v558
      %v745 = vunpack.c.l.b16 %v559
      %v746 = vunpack.c.h.b16 %v559
      %v747 = vunpack.c.l.b16 %v560
      %v748 = vunpack.c.h.b16 %v560
      %v749 = vunpack.c.l.b16 %v561
      %v750 = vunpack.c.h.b16 %v561
      %v751 = vunpack.c.l.b16 %v562
      %v752 = vunpack.c.h.b16 %v562
      %v753 = vunpack.c.l.b16 %v563
      %v754 = vunpack.c.h.b16 %v563
      %v755 = vunpack.c.l.b16 %v564
      %v756 = vunpack.c.h.b16 %v564
      %v757 = vpack.c.b16 %v637, %v629
      %v758 = vpack.c.b16 %v638, %v630
      %v759 = vpack.c.b16 %v639, %v631
      %v760 = vpack.c.b16 %v640, %v632
      %v761 = vpack.c.b16 %v641, %v633
      %v762 = vpack.c.b16 %v642, %v634
      %v763 = vpack.c.b16 %v643, %v635
      %v764 = vpack.c.b16 %v644, %v636
      %v765 = vpack.c.b16 %v653, %v645
      %v766 = vpack.c.b16 %v654, %v646
      %v767 = vpack.c.b16 %v655, %v647
      %v768 = vpack.c.b16 %v656, %v648
      %v769 = vpack.c.b16 %v657, %v649
      %v770 = vpack.c.b16 %v658, %v650
      %v771 = vpack.c.b16 %v659, %v651
      %v772 = vpack.c.b16 %v660, %v652
      %v773 = vpack.c.b16 %v669, %v661
      %v774 = vpack.c.b16 %v670, %v662
      %v775 = vpack.c.b16 %v671, %v663
      %v776 = vpack.c.b16 %v672, %v664
      %v777 = vpack.c.b16 %v673, %v665
      %v778 = vpack.c.b16 %v674, %v666
      %v779 = vpack.c.b16 %v675, %v667
      %v780 = vpack.c.b16 %v676, %v668
      %v781 = vpack.c.b16 %v685, %v677
      %v782 = vpack.c.b16 %v686, %v678
      %v783 = vpack.c.b16 %v687, %v679
      %v784 = vpack.c.b16 %v688, %v680
      %v785 = vpack.c.b16 %v689, %v681
      %v786 = vpack.c.b16 %v690, %v682
      %v787 = vpack.c.b16 %v691, %v683
      %v788 = vpack.c.b16 %v692, %v684
      %v789 = vpack.c.b16 %v701, %v693
      %v790 = vpack.c.b16 %v702, %v694
      %v791 = vpack.c.b16 %v703, %v695
      %v792 = vpack.c.b16 %v704, %v696
      %v793 = vpack.c.b16 %v705, %v697
      %v794 = vpack.c.b16 %v706, %v698
      %v795 = vpack.c.b16 %v707, %v699
      %v796 = vpack.c.b16 %v708, %v700
      %v797 = vpack.c.b16 %v717, %v709
      %v798 = vpack.c.b16 %v718, %v710
      %v799 = vpack.c.b16 %v719, %v711
      %v800 = vpack.c.b16 %v720, %v712
      %v801 = vpack.c.b16 %v721, %v713
      %v802 = vpack.c.b16 %v722, %v714
      %v803 = vpack.c.b16 %v723, %v715
      %v804 = vpack.c.b16 %v724, %v716
      %v805 = vpack.c.b16 %v733, %v725
      %v806 = vpack.c.b16 %v734, %v726
      %v807 = vpack.c.b16 %v735, %v727
      %v808 = vpack.c.b16 %v736, %v728
      %v809 = vpack.c.b16 %v737, %v729
      %v810 = vpack.c.b16 %v738, %v730
      %v811 = vpack.c.b16 %v739, %v731
      %v812 = vpack.c.b16 %v740, %v732
      %v813 = vpack.c.b16 %v749, %v741
      %v814 = vpack.c.b16 %v750, %v742
      %v815 = vpack.c.b16 %v751, %v743
      %v816 = vpack.c.b16 %v752, %v744
      %v817 = vpack.c.b16 %v753, %v745
      %v818 = vpack.c.b16 %v754, %v746
      %v819 = vpack.c.b16 %v755, %v747
      %v820 = vpack.c.b16 %v756, %v748
      %885 = vmatprep.subr.bf16.mxu0 %v814
      %886 = vmatpush1.bf16.msra.mxu0 %v813
      %887 = vmatprep.subr.bf16.mxu0 %v806
      %888 = vmatpush1.bf16.msra.mxu0 %v805
      %889 = vmatprep.subr.bf16.mxu0 %v798
      %890 = vmatpush1.bf16.msra.mxu0 %v797
      %891 = vmatprep.subr.bf16.mxu0 %v790
      %892 = vmatpush1.bf16.msra.mxu0 %v789
      %893 = vmatprep.subr.bf16.mxu0 %v782
      %894 = vmatpush1.bf16.msra.mxu0 %v781
      %895 = vmatprep.subr.bf16.mxu0 %v774
      %896 = vmatpush1.bf16.msra.mxu0 %v773
      %897 = vmatprep.subr.bf16.mxu0 %v766
      %898 = vmatpush1.bf16.msra.mxu0 %v765
      %899 = vmatprep.subr.bf16.mxu0 %v758
      %900 = vmatpush1.bf16.msra.mxu0 %v757
      %901 = vmatprep.subr.bf16.mxu0 0
      %902 = vmatpush2.bf16.msra.mxu0 0
      %903 = vmatprep.subr.bf16.mxu0 0
      %904 = vmatpush2.bf16.msra.mxu0 0
      %905 = vmatprep.subr.bf16.mxu0 0
      %906 = vmatpush2.bf16.msra.mxu0 0
      %907 = vmatprep.subr.bf16.mxu0 0
      %908 = vmatpush2.bf16.msra.mxu0 0
      %909 = vmatprep.subr.bf16.mxu0 0
      %910 = vmatpush2.bf16.msra.mxu0 0
      %911 = vmatprep.subr.bf16.mxu0 0
      %912 = vmatpush2.bf16.msra.mxu0 0
      %913 = vmatprep.subr.bf16.mxu0 0
      %914 = vmatpush2.bf16.msra.mxu0 0
      %915 = vmatprep.subr.bf16.mxu0 0
      %916 = vmatpush2.bf16.msra.mxu0 0
      %917 = vmatprep.mubr.bf16.mxu0 0
      %918 = vmatmul.mubr.bf16.gmra.mxu0 %v500
      %v919 = vpop.f32.mrf.mxu0
      %v920 = vadd.f32 0.0, %v919
      %v921 = vpop.f32.mrf.mxu0
      %v922 = vadd.f32 0.0, %v921
      %v923 = vpop.f32.mrf.mxu0
      %v924 = vadd.f32 0.0, %v923
      %v925 = vpop.f32.mrf.mxu0
      %v926 = vadd.f32 0.0, %v925
      %927 = vdwg.mxu0
      %928 = vmatprep.subr.bf16.mxu0 %v816
      %929 = vmatpush1.bf16.msra.mxu0 %v815
      %930 = vmatprep.subr.bf16.mxu0 %v808
      %931 = vmatpush1.bf16.msra.mxu0 %v807
      %932 = vmatprep.subr.bf16.mxu0 %v800
      %933 = vmatpush1.bf16.msra.mxu0 %v799
      %934 = vmatprep.subr.bf16.mxu0 %v792
      %935 = vmatpush1.bf16.msra.mxu0 %v791
      %936 = vmatprep.subr.bf16.mxu0 %v784
      %937 = vmatpush1.bf16.msra.mxu0 %v783
      %938 = vmatprep.subr.bf16.mxu0 %v776
      %939 = vmatpush1.bf16.msra.mxu0 %v775
      %940 = vmatprep.subr.bf16.mxu0 %v768
      %941 = vmatpush1.bf16.msra.mxu0 %v767
      %942 = vmatprep.subr.bf16.mxu0 %v760
      %943 = vmatpush1.bf16.msra.mxu0 %v759
      %944 = vmatprep.subr.bf16.mxu0 0
      %945 = vmatpush2.bf16.msra.mxu0 0
      %946 = vmatprep.subr.bf16.mxu0 0
      %947 = vmatpush2.bf16.msra.mxu0 0
      %948 = vmatprep.subr.bf16.mxu0 0
      %949 = vmatpush2.bf16.msra.mxu0 0
      %950 = vmatprep.subr.bf16.mxu0 0
      %951 = vmatpush2.bf16.msra.mxu0 0
      %952 = vmatprep.subr.bf16.mxu0 0
      %953 = vmatpush2.bf16.msra.mxu0 0
      %954 = vmatprep.subr.bf16.mxu0 0
      %955 = vmatpush2.bf16.msra.mxu0 0
      %956 = vmatprep.subr.bf16.mxu0 0
      %957 = vmatpush2.bf16.msra.mxu0 0
      %958 = vmatprep.subr.bf16.mxu0 0
      %959 = vmatpush2.bf16.msra.mxu0 0
      %960 = vmatprep.mubr.bf16.mxu0 0
      %961 = vmatmul.mubr.bf16.gmra.mxu0 %v500
      %v962 = vpop.f32.mrf.mxu0
      %v963 = vadd.f32 0.0, %v962
      %v964 = vpop.f32.mrf.mxu0
      %v965 = vadd.f32 0.0, %v964
      %v966 = vpop.f32.mrf.mxu0
      %v967 = vadd.f32 0.0, %v966
      %v968 = vpop.f32.mrf.mxu0
      %v969 = vadd.f32 0.0, %v968
      %970 = vdwg.mxu0
      %971 = vmatprep.subr.bf16.mxu0 %v818
      %972 = vmatpush1.bf16.msra.mxu0 %v817
      %973 = vmatprep.subr.bf16.mxu0 %v810
      %974 = vmatpush1.bf16.msra.mxu0 %v809
      %975 = vmatprep.subr.bf16.mxu0 %v802
      %976 = vmatpush1.bf16.msra.mxu0 %v801
      %977 = vmatprep.subr.bf16.mxu0 %v794
      %978 = vmatpush1.bf16.msra.mxu0 %v793
      %979 = vmatprep.subr.bf16.mxu0 %v786
      %980 = vmatpush1.bf16.msra.mxu0 %v785
      %981 = vmatprep.subr.bf16.mxu0 %v778
      %982 = vmatpush1.bf16.msra.mxu0 %v777
      %983 = vmatprep.subr.bf16.mxu0 %v770
      %984 = vmatpush1.bf16.msra.mxu0 %v769
      %985 = vmatprep.subr.bf16.mxu0 %v762
      %986 = vmatpush1.bf16.msra.mxu0 %v761
      %987 = vmatprep.subr.bf16.mxu0 0
      %988 = vmatpush2.bf16.msra.mxu0 0
      %989 = vmatprep.subr.bf16.mxu0 0
      %990 = vmatpush2.bf16.msra.mxu0 0
      %991 = vmatprep.subr.bf16.mxu0 0
      %992 = vmatpush2.bf16.msra.mxu0 0
      %993 = vmatprep.subr.bf16.mxu0 0
      %994 = vmatpush2.bf16.msra.mxu0 0
      %995 = vmatprep.subr.bf16.mxu0 0
      %996 = vmatpush2.bf16.msra.mxu0 0
      %997 = vmatprep.subr.bf16.mxu0 0
      %998 = vmatpush2.bf16.msra.mxu0 0
      %999 = vmatprep.subr.bf16.mxu0 0
      %1000 = vmatpush2.bf16.msra.mxu0 0
      %1001 = vmatprep.subr.bf16.mxu0 0
      %1002 = vmatpush2.bf16.msra.mxu0 0
      %1003 = vmatprep.mubr.bf16.mxu0 0
      %1004 = vmatmul.mubr.bf16.gmra.mxu0 %v500
      %v1005 = vpop.f32.mrf.mxu0
      %v1006 = vadd.f32 0.0, %v1005
      %v1007 = vpop.f32.mrf.mxu0
      %v1008 = vadd.f32 0.0, %v1007
      %v1009 = vpop.f32.mrf.mxu0
      %v1010 = vadd.f32 0.0, %v1009
      %v1011 = vpop.f32.mrf.mxu0
      %v1012 = vadd.f32 0.0, %v1011
      %1013 = vdwg.mxu0
      %1014 = vmatprep.subr.bf16.mxu0 %v820
      %1015 = vmatpush1.bf16.msra.mxu0 %v819
      %1016 = vmatprep.subr.bf16.mxu0 %v812
      %1017 = vmatpush1.bf16.msra.mxu0 %v811
      %1018 = vmatprep.subr.bf16.mxu0 %v804
      %1019 = vmatpush1.bf16.msra.mxu0 %v803
      %1020 = vmatprep.subr.bf16.mxu0 %v796
      %1021 = vmatpush1.bf16.msra.mxu0 %v795
      %1022 = vmatprep.subr.bf16.mxu0 %v788
      %1023 = vmatpush1.bf16.msra.mxu0 %v787
      %1024 = vmatprep.subr.bf16.mxu0 %v780
      %1025 = vmatpush1.bf16.msra.mxu0 %v779
      %1026 = vmatprep.subr.bf16.mxu0 %v772
      %1027 = vmatpush1.bf16.msra.mxu0 %v771
      %1028 = vmatprep.subr.bf16.mxu0 %v764
      %1029 = vmatpush1.bf16.msra.mxu0 %v763
      %1030 = vmatprep.subr.bf16.mxu0 0
      %1031 = vmatpush2.bf16.msra.mxu0 0
      %1032 = vmatprep.subr.bf16.mxu0 0
      %1033 = vmatpush2.bf16.msra.mxu0 0
      %1034 = vmatprep.subr.bf16.mxu0 0
      %1035 = vmatpush2.bf16.msra.mxu0 0
      %1036 = vmatprep.subr.bf16.mxu0 0
      %1037 = vmatpush2.bf16.msra.mxu0 0
      %1038 = vmatprep.subr.bf16.mxu0 0
      %1039 = vmatpush2.bf16.msra.mxu0 0
      %1040 = vmatprep.subr.bf16.mxu0 0
      %1041 = vmatpush2.bf16.msra.mxu0 0
      %1042 = vmatprep.subr.bf16.mxu0 0
      %1043 = vmatpush2.bf16.msra.mxu0 0
      %1044 = vmatprep.subr.bf16.mxu0 0
      %1045 = vmatpush2.bf16.msra.mxu0 0
      %1046 = vmatprep.mubr.bf16.mxu0 0
      %1047 = vmatmul.mubr.bf16.gmra.mxu0 %v500
      %v1048 = vpop.f32.mrf.mxu0
      %v1049 = vadd.f32 0.0, %v1048
      %v1050 = vpop.f32.mrf.mxu0
      %v1051 = vadd.f32 0.0, %v1050
      %v1052 = vpop.f32.mrf.mxu0
      %v1053 = vadd.f32 0.0, %v1052
      %v1054 = vpop.f32.mrf.mxu0
      %v1055 = vadd.f32 0.0, %v1054
      %1056 = vdwg.mxu0
      %v1057 = vld [vmem:[%s339] sm:$0xff]
      %v1058 = vmax.f32 %v920, %v924
      %v1059 = vrot.slane %v1058, 4
      %v1060 = vmax.f32 %v1058, %v1059
      %v1061 = vrot.slane %v1060, 2
      %v1062 = vmax.f32 %v1060, %v1061
      %v1063 = vrot.slane %v1062, 1
      %v1064 = vmax.f32 %v1062, %v1063
      %v1065 = vmax.f32 %v922, %v926
      %v1066 = vrot.slane %v1065, 4
      %v1067 = vmax.f32 %v1065, %v1066
      %v1068 = vrot.slane %v1067, 2
      %v1069 = vmax.f32 %v1067, %v1068
      %v1070 = vrot.slane %v1069, 1
      %v1071 = vmax.f32 %v1069, %v1070
      %v1072 = vmax.f32 %v963, %v967
      %v1073 = vrot.slane %v1072, 4
      %v1074 = vmax.f32 %v1072, %v1073
      %v1075 = vrot.slane %v1074, 2
      %v1076 = vmax.f32 %v1074, %v1075
      %v1077 = vrot.slane %v1076, 1
      %v1078 = vmax.f32 %v1076, %v1077
      %v1079 = vmax.f32 %v965, %v969
      %v1080 = vrot.slane %v1079, 4
      %v1081 = vmax.f32 %v1079, %v1080
      %v1082 = vrot.slane %v1081, 2
      %v1083 = vmax.f32 %v1081, %v1082
      %v1084 = vrot.slane %v1083, 1
      %v1085 = vmax.f32 %v1083, %v1084
      %v1086 = vmax.f32 %v1006, %v1010
      %v1087 = vrot.slane %v1086, 4
      %v1088 = vmax.f32 %v1086, %v1087
      %v1089 = vrot.slane %v1088, 2
      %v1090 = vmax.f32 %v1088, %v1089
      %v1091 = vrot.slane %v1090, 1
      %v1092 = vmax.f32 %v1090, %v1091
      %v1093 = vmax.f32 %v1008, %v1012
      %v1094 = vrot.slane %v1093, 4
      %v1095 = vmax.f32 %v1093, %v1094
      %v1096 = vrot.slane %v1095, 2
      %v1097 = vmax.f32 %v1095, %v1096
      %v1098 = vrot.slane %v1097, 1
      %v1099 = vmax.f32 %v1097, %v1098
      %v1100 = vmax.f32 %v1049, %v1053
      %v1101 = vrot.slane %v1100, 4
      %v1102 = vmax.f32 %v1100, %v1101
      %v1103 = vrot.slane %v1102, 2
      %v1104 = vmax.f32 %v1102, %v1103
      %v1105 = vrot.slane %v1104, 1
      %v1106 = vmax.f32 %v1104, %v1105
      %v1107 = vmax.f32 %v1051, %v1055
      %v1108 = vrot.slane %v1107, 4
      %v1109 = vmax.f32 %v1107, %v1108
      %v1110 = vrot.slane %v1109, 2
      %v1111 = vmax.f32 %v1109, %v1110
      %v1112 = vrot.slane %v1111, 1
      %v1113 = vmax.f32 %v1111, %v1112
      %v1122 = vcombine.low %v1064, %v1071
      %v1123 = vcombine.low %v1078, %v1085
      %v1124 = vcombine.low %v1092, %v1099
      %v1125 = vcombine.low %v1106, %v1113
      %v1127 = vunpack.c.l.s4 1966171168
      %v1128 = vunpack.c.0.s8 %v1127
      %v1129 = vlaneseq
      %v1130 = vshrl.u32 %v1129, 7
      %v1131 = vsub.s32 %v1128, %v1130
      %v1132 = vrot.slane %v1122, %v1131
      %v1134 = vunpack.c.l.s4 1966171168
      %v1135 = vunpack.c.0.s8 %v1134
      %v1136 = vlaneseq
      %v1137 = vshrl.u32 %v1136, 7
      %v1138 = vsub.s32 %v1135, %v1137
      %v1139 = vrot.slane %v1123, %v1138
      %v1141 = vunpack.c.l.s4 1966171168
      %v1142 = vunpack.c.0.s8 %v1141
      %v1143 = vlaneseq
      %v1144 = vshrl.u32 %v1143, 7
      %v1145 = vsub.s32 %v1142, %v1144
      %v1146 = vrot.slane %v1124, %v1145
      %v1148 = vunpack.c.l.s4 1966171168
      %v1149 = vunpack.c.0.s8 %v1148
      %v1150 = vlaneseq
      %v1151 = vshrl.u32 %v1150, 7
      %v1152 = vsub.s32 %v1149, %v1151
      %v1153 = vrot.slane %v1125, %v1152
      %v1154 = vcombine.low %v1132, %v1139
      %v1155 = vcombine.low %v1146, %v1153
      %v1157 = vunpack.c.l.s4 1966171168
      %v1158 = vunpack.c.0.s8 %v1157
      %v1159 = vlaneseq
      %v1160 = vshrl.u32 %v1159, 7
      %v1161 = vsub.s32 %v1158, %v1160
      %v1162 = vrot.slane %v1154, %v1161
      %v1164 = vunpack.c.l.s4 1966171168
      %v1165 = vunpack.c.0.s8 %v1164
      %v1166 = vlaneseq
      %v1167 = vshrl.u32 %v1166, 7
      %v1168 = vsub.s32 %v1165, %v1167
      %v1169 = vrot.slane %v1155, %v1168
      %v1170 = vcombine.low %v1162, %v1169
      %v1172 = vmax.f32 %v1057, %v1170
      %1173 = vst [vmem:[%s339] sm:$0xff] %v1172
      // Predicated region
      $region53: #{_lambda_.3} parent=47 // pred_check
        %p1174 = pneg %p342
      $region54: #{_lambda_.3} parent=47 // pred_check_branch
        %1176 = sbr.rel (%p1174) target = $region56
      $region55: #{_lambda_.3} parent=47 // pred_region
        %v1177 = vld [vmem:[%s339] sm:$0xff]
        %v1178 = vld [vmem:[%s6] sm:$0xff]
        %v1179 = vadd.f32 %v1177, %v1178
        %1180 = vst [vmem:[%s339] sm:$0xff] %v1179
      $region56: #{_lambda_.3} parent=47 // pred_fallthru
        _
      %s1181 = sadd.s32 %s23, %s24
      %p1182 = scmp.lt.s32.totalorder %s1181, 1
      %s1183 = scalar_select %p1182, %s1181, 1
      %s1184 = smul.addr %s1183, 8
      %s1185 = scalar_lea.vmem %s7, %s1184
      // Predicated region
      $region57: #{_lambda_.3} parent=47 // pred_check
        %p1186 = pneg %p218
      $region58: #{_lambda_.3} parent=47 // pred_check_branch
        %1188 = sbr.rel (%p1186) target = $region60
      $region59: #{_lambda_.3} parent=47 // pred_region
        %s1189 = sadd.s32 %s23, %s24
      $region60: #{_lambda_.3} parent=47 // pred_fallthru
        _
    $region48: #{_lambda_.3} parent=5 // pred_fallthru
      _
    %p1190 = scmp.le.s32.totalorder 2, %s13
    // Predicated region
    $region61: #{_lambda_.3} parent=5 // pred_check
      %p1191 = pneg %p1190
    $region62: #{_lambda_.3} parent=5 // pred_check_branch
      %1193 = sbr.rel (%p1191) target = $region64
    $region63: #{_lambda_.3} parent=5 // pred_region
      %s1194 = ssub.s32 %s13, 2
      // Predicated region
      $region65: #{_lambda_.3} parent=63 // pred_check
        %p1195 = pneg %p224
      $region66: #{_lambda_.3} parent=63 // pred_check_branch
        %1197 = sbr.rel (%p1195) target = $region68
      $region67: #{_lambda_.3} parent=63 // pred_region
        %s1198 = sadd.s32 %s26, %s27
        %p1199 = scmp.lt.s32.totalorder %s1198, 1
        %s1200 = scalar_select %p1199, %s1198, 1
        %s1201 = smul.addr %s1200, 8
        %s1202 = scalar_lea.vmem %s7, %s1201
      $region68: #{_lambda_.3} parent=63 // pred_fallthru
        _
    $region64: #{_lambda_.3} parent=5 // pred_fallthru
      _
  $region6: #{_lambda_.3} parent=0 // loop_footer
    %s17 = sadd.s32 1, %s13
  $region7: #{_lambda_.3} parent=0 // loop_footer_branch
    %12 = sbr.rel target = $region3
  $region8: #{_lambda_.3} parent=0 // loop_exit
    _

</llo_original>
